<compile_context>
chip_gen: v6e
topology: v6e:2x2x1
jax: 0.10.0
libtpu: 0.0.40
codegen_flags: <defaults>
</compile_context>

<pallas_src>
import functools
import math

import numpy as np
import jax
import jax.numpy as jnp
from jax import lax
from jax.experimental import pallas as pl
from jax.experimental.pallas import tpu as pltpu

MATMUL_DTYPE = jnp.bfloat16   # MXU operand / embedding-transport dtype

# row indices of the packed per-block "small params" tensor (nb, 10, H)
_LN1_G, _LN1_B, _BQ, _BK, _BV, _BO, _LN2_G, _LN2_B, _B1, _B2 = range(10)


# ----------------------------- shared math helpers --------------------------

def _matmul_nt(x, w):
    """x @ w.T (contract the last dim of each operand), f32 accumulation."""
    return lax.dot_general(x, w, (((x.ndim - 1,), (w.ndim - 1,)), ((), ())),
                           preferred_element_type=jnp.float32)


def _matmul(x, w):
    """x @ w (contract last dim of x with first dim of w), f32 accumulation."""
    return lax.dot_general(x, w, (((x.ndim - 1,), (0,)), ((), ())),
                           preferred_element_type=jnp.float32)


def _layernorm(x, g, b, eps=1e-8):
    mu = jnp.mean(x, axis=-1, keepdims=True)
    var = jnp.mean(jnp.square(x - mu), axis=-1, keepdims=True)
    return (x - mu) * lax.rsqrt(var + eps) * g + b      # rsqrt -> EUP slot


def _softmax_last(s):
    m = jnp.max(s, axis=-1, keepdims=True)
    e = jnp.exp(s - m)
    return e / jnp.sum(e, axis=-1, keepdims=True)


# ------------------------------ fused Pallas kernel --------------------------

def sasrec_fused_kernel(
        a_log_ref, w_log_ref, p_emb_ref,
        a_pos_ref, w_pos_ref, a_neg_ref, w_neg_ref,
        bmat_ref, wq_ref, wkv_ref, wo_ref, w1_ref, w2_ref, small_ref,
        lastln_ref,
        pos_o_ref, neg_o_ref,
        seq_ref,
        *, num_heads, emb_scale):
    kb = pl.program_id(1)                   # transformer-block index (arbitrary)
    n_blocks = pl.num_programs(1)

    Bt, L, H = w_log_ref.shape
    M = Bt * L
    dh = H // num_heads
    scale = 1.0 / math.sqrt(dh)

    def lowrank_rows(a_ref, w_ref):
        # Rows of (A @ B + item_emb) for the gathered indices only -- the full
        # (vocab, H) item matrix is never materialized in HBM.
        a = a_ref[...].reshape(M, a_ref.shape[-1])                 # bf16
        return _matmul(a, bmat_ref[...]) + w_ref[...].reshape(M, H)

    # ---- first block step: build the input embeddings (VMEM-resident) ------
    @pl.when(kb == 0)
    def _init():
        seq_ref[...] = (lowrank_rows(a_log_ref, w_log_ref) * emb_scale
                        + p_emb_ref[...].reshape(M, H))
        # TODO(synk): emb_dropout / attention dropout / FFN dropout are
        # identity here (eval-mode determinism).

    x = seq_ref[...]                                    # (M, H) f32
    sp = small_ref[0]                                   # (10, H) f32

    # causal additive mask, built on the fly and broadcast ONCE per block step
    # (no (L, L) HBM input, no re-broadcast per head)
    row = lax.broadcasted_iota(jnp.int32, (L, L), 0)
    col = lax.broadcasted_iota(jnp.int32, (L, L), 1)
    mask3 = jnp.broadcast_to(
        jnp.where(col <= row, 0.0, -1e30).astype(jnp.float32)[None], (Bt, L, L))

    # ---- transformer block `kb` on the flattened (Bt*L, H) activations -----
    q_in = _layernorm(x, sp[_LN1_G], sp[_LN1_B])        # (M, H) f32
    q_c = q_in.astype(MATMUL_DTYPE)
    x_c = x.astype(MATMUL_DTYPE)

    # fused, lane-dense projections: 1 matmul for Q, 1 matmul for K|V
    q = (_matmul_nt(q_c, wq_ref[0]) + sp[_BQ]).reshape(Bt, L, H)
    kv = _matmul_nt(x_c, wkv_ref[0])                    # (M, 2H) f32
    k = (kv[:, :H] + sp[_BK]).reshape(Bt, L, H)
    v = (kv[:, H:] + sp[_BV]).reshape(Bt, L, H)

    # per-head attention (Python loop: num_heads is small & static here;
    # TODO(synk): use lax.fori_loop + VMEM accumulator if num_heads grows)
    mha = jnp.zeros((M, H), jnp.float32)
    for h in range(num_heads):
        sl = slice(h * dh, (h + 1) * dh)
        qh = q[..., sl].astype(MATMUL_DTYPE)
        kh = k[..., sl].astype(MATMUL_DTYPE)
        vh = v[..., sl].astype(MATMUL_DTYPE)
        s = jnp.einsum("bqd,bkd->bqk", qh, kh,
                       preferred_element_type=jnp.float32) * scale + mask3
        e = jnp.exp(s - jnp.max(s, axis=-1, keepdims=True))
        pw = e * pl.reciprocal(jnp.sum(e, axis=-1, keepdims=True), approx=True)
        oh = jnp.einsum("bqk,bkd->bqd", pw.astype(MATMUL_DTYPE), vh,
                        preferred_element_type=jnp.float32)       # (Bt, L, dh)
        # fold head h straight through its slice of the output projection
        mha = mha + _matmul(oh.reshape(M, dh).astype(MATMUL_DTYPE),
                            wo_ref[0, h])
    mha = mha + sp[_BO]

    x2 = q_in + mha                                     # residual on LN'ed Q
    y = _layernorm(x2, sp[_LN2_G], sp[_LN2_B])
    # PointWiseFeedForward: Conv1d(k=1) == per-position linear, dropout = id
    h1 = jnp.maximum(_matmul_nt(y.astype(MATMUL_DTYPE), w1_ref[0]) + sp[_B1], 0.0)
    ff = _matmul_nt(h1.astype(MATMUL_DTYPE), w2_ref[0]) + sp[_B2]
    out = ff + y

    # carry the activations only when another block follows (no dead
    # (M, H) store+load round trip on the last block step)
    @pl.when(kb != n_blocks - 1)
    def _carry():
        seq_ref[...] = out

    # ---- last block step: final layernorm + pos/neg logits -----------------
    @pl.when(kb == n_blocks - 1)
    def _finalize():
        feats = _layernorm(out, lastln_ref[0], lastln_ref[1]).reshape(Bt, L, H)
        pos_e = lowrank_rows(a_pos_ref, w_pos_ref).reshape(Bt, L, H)
        neg_e = lowrank_rows(a_neg_ref, w_neg_ref).reshape(Bt, L, H)
        # NOTE: (Bt, L) stores are lane-sparse for L < 128; flattening to a
        # (1, Bt*L) row would need an extra in-kernel relayout, so the simple
        # layout is kept (tiny absolute byte count).
        pos_o_ref[...] = jnp.sum(feats * pos_e, axis=-1)
        neg_o_ref[...] = jnp.sum(feats * neg_e, axis=-1)


# ------------------------------ tiling heuristics ----------------------------

def _tile_vmem_bytes(bt, L, H, R):
    """Rough per-batch-tile VMEM footprint (double-buffered pipeline bufs)."""
    m = bt * L
    data = 2 * ((5 * m * H + 2 * m * R) * 2)      # bf16 gathered slabs
    outs = 2 * (2 * m * 4)                        # two f32 logit blocks
    wts = 2 * (6 * H * H * 2 + 10 * H * 4)        # per-block weights + smalls
    shared = R * H * 2 + 2 * H * 4
    scratch = m * H * 4                           # resident activation slab
    return data + outs + wts + shared + scratch


def _choose_batch_tile(batch, L, H, R, target_rows=512, budget_bytes=24 << 20):
    """Pick the largest legal batch tile Bt that fits the VMEM budget, filling
    the MXU M dimension (Bt*L -> target_rows) while preferring to keep >=2
    batch tiles so v7x's two TensorCores can both work the 'parallel' axis.
    Legality: Bt divides B and (Bt % 8 == 0 or Bt == B) for the (Bt, L)
    output blocks."""
    cands = [d for d in range(1, batch + 1)
             if batch % d == 0 and (d % 8 == 0 or d == batch)]
    fit = [d for d in cands if _tile_vmem_bytes(d, L, H, R) <= budget_bytes]
    if not fit:
        fit = cands[:1]
    best = fit[0]
    for d in fit:
        if batch // d >= 2:
            best = d                      # largest tile that keeps >= 2 tiles
        elif best * L < target_rows:
            best = d                      # single tile only if rows underfill
    return best


# ------------------------------ Pallas wrapper -------------------------------

def sasrec_colr_forward(params, log_seqs, pos_seqs, neg_seqs, *, num_heads):
    item_emb = params["item_emb"]
    A = params["A"]
    Bmat = params["B"]
    H = item_emb.shape[1]
    R = A.shape[1]
    B, L = log_seqs.shape
    nb = len(params["blocks"])
    nh = num_heads
    assert H % nh == 0
    dh = H // nh

    # --- embedding-table gathers: data-dependent -> JAX glue.  Gathered rows
    #     are shipped in bf16 (they only feed bf16 matmul operands / f32 adds
    #     inside the kernel); the low-rank correction happens in the kernel.
    item_bf = item_emb.astype(MATMUL_DTYPE)
    a_tbl = A.astype(MATMUL_DTYPE)
    pos_tbl = params["pos_emb"].astype(MATMUL_DTYPE)
    a_log = jnp.take(a_tbl, log_seqs, axis=0)          # (B, L, R) bf16
    w_log = jnp.take(item_bf, log_seqs, axis=0)        # (B, L, H) bf16
    a_pos = jnp.take(a_tbl, pos_seqs, axis=0)
    w_pos = jnp.take(item_bf, pos_seqs, axis=0)
    a_neg = jnp.take(a_tbl, neg_seqs, axis=0)
    w_neg = jnp.take(item_bf, neg_seqs, axis=0)
    poss = (jnp.arange(1, L + 1, dtype=jnp.int32)[None, :]
            * (log_seqs != 0).astype(jnp.int32))
    p_emb = jnp.take(pos_tbl, poss, axis=0)            # (B, L, H) bf16

    # --- stack per-block parameters along a leading num_blocks axis ---------
    def stack(name):
        return jnp.stack([blk[name] for blk in params["blocks"]])

    wq = stack("wq").astype(MATMUL_DTYPE)                               # (nb,H,H)
    wkv = jnp.concatenate([stack("wk"), stack("wv")],
                          axis=1).astype(MATMUL_DTYPE)                  # (nb,2H,H)
    # output projection pre-split per head: head h uses cols [h*dh,(h+1)*dh)
    wo = (stack("wo").reshape(nb, H, nh, dh).transpose(0, 2, 3, 1)
          .astype(MATMUL_DTYPE))                                        # (nb,nh,dh,H)
    w1 = stack("w1").astype(MATMUL_DTYPE)
    w2 = stack("w2").astype(MATMUL_DTYPE)
    # pack the 10 tiny (1,H) per-block tensors into one lane-dense array
    small = jnp.concatenate(
        [stack("ln1_g"), stack("ln1_b"), stack("bq"), stack("bk"), stack("bv"),
         stack("bo"), stack("ln2_g"), stack("ln2_b"), stack("b1"), stack("b2")],
        axis=1)                                                         # (nb,10,H)
    lastln = jnp.concatenate([params["last_ln_g"], params["last_ln_b"]],
                             axis=0)                                    # (2,H)
    bmat_bf = Bmat.astype(MATMUL_DTYPE)

    Bt = _choose_batch_tile(B, L, H, R)
    num_tiles = B // Bt
    grid = (num_tiles, nb)              # blocks innermost ("arbitrary")
    vmem_limit = int(min(max(2 * _tile_vmem_bytes(Bt, L, H, R), 32 << 20),
                         56 << 20))     # explicit, v7x-safe (64 MiB physical)

    def data_spec(last_dim):
        return pl.BlockSpec((Bt, L, last_dim), lambda b, k: (b, 0, 0))

    def block_spec(arr):
        nd = arr.ndim
        return pl.BlockSpec((1,) + arr.shape[1:],
                            lambda b, k, _n=nd: (k,) + (0,) * (_n - 1))

    def shared_spec(arr):
        nd = arr.ndim
        return pl.BlockSpec(arr.shape, lambda b, k, _n=nd: (0,) * _n)

    in_specs = [data_spec(R), data_spec(H), data_spec(H),
                data_spec(R), data_spec(H), data_spec(R), data_spec(H),
                shared_spec(bmat_bf),
                block_spec(wq), block_spec(wkv), block_spec(wo),
                block_spec(w1), block_spec(w2), block_spec(small),
                shared_spec(lastln)]
    out_specs = (pl.BlockSpec((Bt, L), lambda b, k: (b, 0)),
                 pl.BlockSpec((Bt, L), lambda b, k: (b, 0)))

    kernel = functools.partial(sasrec_fused_kernel,
                               num_heads=nh, emb_scale=math.sqrt(H))

    pos_logits, neg_logits = pl.pallas_call(
        kernel,
        out_shape=(jax.ShapeDtypeStruct((B, L), jnp.float32),
                   jax.ShapeDtypeStruct((B, L), jnp.float32)),
        grid=grid,
        in_specs=in_specs,
        out_specs=out_specs,
        scratch_shapes=[pltpu.VMEM((Bt * L, H), jnp.float32)],
        compiler_params=pltpu.CompilerParams(
            dimension_semantics=("parallel", "arbitrary"),
            vmem_limit_bytes=vmem_limit),
    )(a_log, w_log, p_emb, a_pos, w_pos, a_neg, w_neg, bmat_bf,
      wq, wkv, wo, w1, w2, small, lastln)
    return pos_logits, neg_logits


# --------------------------- pure-JAX reference -----------------------------

def reference_forward(params, log_seqs, pos_seqs, neg_seqs, *, num_heads,
                      matmul_dtype=None):
    """Reference of the PyTorch forward.  If matmul_dtype is given, matmul
    operands and the embedding tables are rounded exactly like the kernel /
    wrapper do (for a tight check)."""
    if matmul_dtype is None:
        cast = lambda a: a
        item_tbl = params["item_emb"]
        pos_tbl = params["pos_emb"]
    else:
        cast = lambda a: a.astype(matmul_dtype)
        item_tbl = params["item_emb"].astype(matmul_dtype).astype(jnp.float32)
        pos_tbl = params["pos_emb"].astype(matmul_dtype).astype(jnp.float32)

    H = params["item_emb"].shape[1]
    B, L = log_seqs.shape
    item_emb_mat = _matmul(cast(params["A"]), cast(params["B"])) + item_tbl
    seqs = item_emb_mat[log_seqs] * math.sqrt(H)
    poss = (jnp.arange(1, L + 1, dtype=jnp.int32)[None, :]
            * (log_seqs != 0).astype(jnp.int32))
    seqs = seqs + pos_tbl[poss]

    li = jnp.arange(L)
    mask = jnp.where(li[None, :] <= li[:, None], 0.0, -1e30).astype(jnp.float32)

    dh = H // num_heads
    scale = 1.0 / math.sqrt(dh)
    for p in params["blocks"]:
        q_in = _layernorm(seqs, p["ln1_g"], p["ln1_b"])
        q = _matmul_nt(cast(q_in), cast(p["wq"])) + p["bq"]
        k = _matmul_nt(cast(seqs), cast(p["wk"])) + p["bk"]
        v = _matmul_nt(cast(seqs), cast(p["wv"])) + p["bv"]
        heads = []
        for h in range(num_heads):
            sl = slice(h * dh, (h + 1) * dh)
            s = jnp.einsum("bqd,bkd->bqk", cast(q[..., sl]), cast(k[..., sl]),
                           preferred_element_type=jnp.float32) * scale + mask
            pw = _softmax_last(s)
            heads.append(jnp.einsum("bqk,bkd->bqd", cast(pw), cast(v[..., sl]),
                                    preferred_element_type=jnp.float32))
        attn = jnp.concatenate(heads, axis=-1)
        mha = _matmul_nt(cast(attn), cast(p["wo"])) + p["bo"]
        x2 = q_in + mha
        y = _layernorm(x2, p["ln2_g"], p["ln2_b"])
        h1 = jnp.maximum(_matmul_nt(cast(y), cast(p["w1"])) + p["b1"], 0.0)
        seqs = _matmul_nt(cast(h1), cast(p["w2"])) + p["b2"] + y

    feats = _layernorm(seqs, params["last_ln_g"], params["last_ln_b"])
    pos_embs = item_emb_mat[pos_seqs]
    neg_embs = item_emb_mat[neg_seqs]
    return (feats * pos_embs).sum(-1), (feats * neg_embs).sum(-1)


# ------------------------------ parameter init ------------------------------

def init_params(key, item_num, maxlen, hidden, rank, num_blocks):
    ks = jax.random.split(key, 8 + num_blocks)
    item_emb = 0.02 * jax.random.normal(ks[0], (item_num + 1, hidden), jnp.float32)
    item_emb = item_emb.at[0].set(0.0)          # padding_idx=0
    pos_emb = 0.02 * jax.random.normal(ks[1], (maxlen + 1, hidden), jnp.float32)
    pos_emb = pos_emb.at[0].set(0.0)            # padding_idx=0
    # NOTE: the module initializes A to zeros; use small random values here so
    # the low-rank-update path does non-trivial work (post-training state).
    A = 0.05 * jax.random.normal(ks[2], (item_num + 1, rank), jnp.float32)
    Bm = math.sqrt(1.0 / rank) * jax.random.normal(ks[3], (rank, hidden), jnp.float32)

    blocks = []
    for i in range(num_blocks):
        bk = jax.random.split(ks[4 + i], 12)
        s = 0.05
        blocks.append(dict(
            ln1_g=jnp.ones((1, hidden), jnp.float32),
            ln1_b=jnp.zeros((1, hidden), jnp.float32),
            wq=s * jax.random.normal(bk[0], (hidden, hidden), jnp.float32),
            wk=s * jax.random.normal(bk[1], (hidden, hidden), jnp.float32),
            wv=s * jax.random.normal(bk[2], (hidden, hidden), jnp.float32),
            bq=0.01 * jax.random.normal(bk[3], (1, hidden), jnp.float32),
            bk=0.01 * jax.random.normal(bk[4], (1, hidden), jnp.float32),
            bv=0.01 * jax.random.normal(bk[5], (1, hidden), jnp.float32),
            wo=s * jax.random.normal(bk[6], (hidden, hidden), jnp.float32),
            bo=0.01 * jax.random.normal(bk[7], (1, hidden), jnp.float32),
            ln2_g=jnp.ones((1, hidden), jnp.float32),
            ln2_b=jnp.zeros((1, hidden), jnp.float32),
            w1=s * jax.random.normal(bk[8], (hidden, hidden), jnp.float32),
            b1=0.01 * jax.random.normal(bk[9], (1, hidden), jnp.float32),
            w2=s * jax.random.normal(bk[10], (hidden, hidden), jnp.float32),
            b2=0.01 * jax.random.normal(bk[11], (1, hidden), jnp.float32),
        ))
    return dict(item_emb=item_emb, pos_emb=pos_emb, A=A, B=Bm, blocks=blocks,
                last_ln_g=jnp.ones((1, hidden), jnp.float32),
                last_ln_b=jnp.zeros((1, hidden), jnp.float32))


# ----------------------------------- main ------------------------------------

if __name__ == "__main__":
    item_num, maxlen, hidden, rank = 100, 8, 32, 4
    num_heads, num_blocks, batch = 2, 2, 2

    key = jax.random.PRNGKey(0)
    kp, kd = jax.random.split(key)
    params = init_params(kp, item_num, maxlen, hidden, rank, num_blocks)

    k1, k2, k3 = jax.random.split(kd, 3)
    log_seqs = jax.random.randint(k1, (batch, maxlen), 1, item_num + 1, jnp.int32)
    log_seqs = log_seqs.at[:, :2].set(0)        # leading padding
    pos_seqs = jax.random.randint(k2, (batch, maxlen), 1, item_num + 1, jnp.int32)
    neg_seqs = jax.random.randint(k3, (batch, maxlen), 1, item_num + 1, jnp.int32)
    user_ids = jnp.arange(batch, dtype=jnp.int32)  # unused by forward (as in PyTorch)

    fwd = jax.jit(functools.partial(sasrec_colr_forward, num_heads=num_heads))
    pos_logits, neg_logits = fwd(params, log_seqs, pos_seqs, neg_seqs)
    jax.block_until_ready((pos_logits, neg_logits))

    assert pos_logits.shape == (batch, maxlen)
    assert neg_logits.shape == (batch, maxlen)

    # tight check: reference with the same bf16 casts as the kernel/wrapper
    # (tolerance covers the approx-reciprocal softmax denominator in-kernel)
    ref_pos_bf16, ref_neg_bf16 = reference_forward(
        params, log_seqs, pos_seqs, neg_seqs, num_heads=num_heads,
        matmul_dtype=MATMUL_DTYPE)
    assert np.allclose(np.asarray(pos_logits), np.asarray(ref_pos_bf16),
                       atol=1e-2, rtol=1e-2)
    assert np.allclose(np.asarray(neg_logits), np.asarray(ref_neg_bf16),
                       atol=1e-2, rtol=1e-2)

    # loose check: pure-f32 reference of the PyTorch module
    ref_pos, ref_neg = reference_forward(
        params, log_seqs, pos_seqs, neg_seqs, num_heads=num_heads)
    assert np.allclose(np.asarray(pos_logits), np.asarray(ref_pos),
                       atol=5e-2, rtol=5e-2)
    assert np.allclose(np.asarray(neg_logits), np.asarray(ref_neg),
                       atol=5e-2, rtol=5e-2)

    print("KERNEL_OK")
</pallas_src>

<mosaic_0001>
module attributes {stable_mosaic.version = 11 : i64} {
  func.func @sasrec_fused_kernel(%arg0: i32, %arg1: i32, %arg2: memref<2x8x4xbf16, #tpu.memory_space<vmem>>, %arg3: memref<2x8x32xbf16, #tpu.memory_space<vmem>>, %arg4: memref<2x8x32xbf16, #tpu.memory_space<vmem>>, %arg5: memref<2x8x4xbf16, #tpu.memory_space<vmem>>, %arg6: memref<2x8x32xbf16, #tpu.memory_space<vmem>>, %arg7: memref<2x8x4xbf16, #tpu.memory_space<vmem>>, %arg8: memref<2x8x32xbf16, #tpu.memory_space<vmem>>, %arg9: memref<4x32xbf16, #tpu.memory_space<vmem>>, %arg10: memref<1x32x32xbf16, #tpu.memory_space<vmem>>, %arg11: memref<1x64x32xbf16, #tpu.memory_space<vmem>>, %arg12: memref<1x2x16x32xbf16, #tpu.memory_space<vmem>>, %arg13: memref<1x32x32xbf16, #tpu.memory_space<vmem>>, %arg14: memref<1x32x32xbf16, #tpu.memory_space<vmem>>, %arg15: memref<1x10x32xf32, #tpu.memory_space<vmem>>, %arg16: memref<2x32xf32, #tpu.memory_space<vmem>>, %arg17: memref<2x8xf32, #tpu.memory_space<vmem>>, %arg18: memref<2x8xf32, #tpu.memory_space<vmem>>, %arg19: memref<16x32xf32, #tpu.memory_space<vmem>>) attributes {dimension_semantics = [#tpu.dimension_semantics<parallel>, #tpu.dimension_semantics<arbitrary>], iteration_bounds = array<i64: 1, 2>, scalar_prefetch = 0 : i64, scratch_operands = 1 : i64, tpu.core_type = #tpu.core_type<tc>, window_params = [{transform_indices = @transform_0, window_bounds = array<i64: 2, 8, 4>}, {transform_indices = @transform_1, window_bounds = array<i64: 2, 8, 32>}, {transform_indices = @transform_2, window_bounds = array<i64: 2, 8, 32>}, {transform_indices = @transform_3, window_bounds = array<i64: 2, 8, 4>}, {transform_indices = @transform_4, window_bounds = array<i64: 2, 8, 32>}, {transform_indices = @transform_5, window_bounds = array<i64: 2, 8, 4>}, {transform_indices = @transform_6, window_bounds = array<i64: 2, 8, 32>}, {pipeline_mode = #tpu.pipeline_mode<synchronous>, transform_indices = @transform_7, window_bounds = array<i64: 4, 32>}, {transform_indices = @transform_8, window_bounds = array<i64: 1, 32, 32>}, {transform_indices = @transform_9, window_bounds = array<i64: 1, 64, 32>}, {transform_indices = @transform_10, window_bounds = array<i64: 1, 2, 16, 32>}, {transform_indices = @transform_11, window_bounds = array<i64: 1, 32, 32>}, {transform_indices = @transform_12, window_bounds = array<i64: 1, 32, 32>}, {transform_indices = @transform_13, window_bounds = array<i64: 1, 10, 32>}, {pipeline_mode = #tpu.pipeline_mode<synchronous>, transform_indices = @transform_14, window_bounds = array<i64: 2, 32>}, {transform_indices = @transform_15, window_bounds = array<i64: 2, 8>}, {transform_indices = @transform_16, window_bounds = array<i64: 2, 8>}]} {
    %c0_i32 = arith.constant 0 : i32
    %0 = arith.cmpi eq, %arg1, %c0_i32 : i32
    %1 = arith.extui %0 : i1 to i32
    %c0_i32_0 = arith.constant 0 : i32
    %2 = arith.cmpi ne, %1, %c0_i32_0 : i32
    scf.if %2 {
      %c0_56 = arith.constant 0 : index
      %c0_57 = arith.constant 0 : index
      %c0_58 = arith.constant 0 : index
      %189 = vector.load %arg2[%c0_56, %c0_57, %c0_58] : memref<2x8x4xbf16, #tpu.memory_space<vmem>>, vector<2x8x4xbf16>
      %190 = vector.shape_cast %189 : vector<2x8x4xbf16> to vector<16x4xbf16>
      %c0_59 = arith.constant 0 : index
      %c0_60 = arith.constant 0 : index
      %191 = vector.load %arg9[%c0_59, %c0_60] : memref<4x32xbf16, #tpu.memory_space<vmem>>, vector<4x32xbf16>
      %cst_61 = arith.constant dense<0.000000e+00> : vector<16x32xf32>
      %192 = tpu.matmul %190, %191, %cst_61 {dimension_numbers = #tpu.dot_dimension_numbers<[1], [0], [0], [1], [0, 0, 1, 1], [], []>} : vector<16x4xbf16>, vector<4x32xbf16>, vector<16x32xf32> -> vector<16x32xf32>
      %c0_62 = arith.constant 0 : index
      %c0_63 = arith.constant 0 : index
      %c0_64 = arith.constant 0 : index
      %193 = vector.load %arg3[%c0_62, %c0_63, %c0_64] : memref<2x8x32xbf16, #tpu.memory_space<vmem>>, vector<2x8x32xbf16>
      %194 = vector.shape_cast %193 : vector<2x8x32xbf16> to vector<16x32xbf16>
      %195 = arith.extf %194 : vector<16x32xbf16> to vector<16x32xf32>
      %196 = arith.addf %192, %195 : vector<16x32xf32>
      %cst_65 = arith.constant 5.65685415 : f32
      %197 = vector.broadcast %cst_65 : f32 to vector<16x32xf32>
      %198 = arith.mulf %196, %197 : vector<16x32xf32>
      %c0_66 = arith.constant 0 : index
      %c0_67 = arith.constant 0 : index
      %c0_68 = arith.constant 0 : index
      %199 = vector.load %arg4[%c0_66, %c0_67, %c0_68] : memref<2x8x32xbf16, #tpu.memory_space<vmem>>, vector<2x8x32xbf16>
      %200 = vector.shape_cast %199 : vector<2x8x32xbf16> to vector<16x32xbf16>
      %201 = arith.extf %200 : vector<16x32xbf16> to vector<16x32xf32>
      %202 = arith.addf %198, %201 : vector<16x32xf32>
      %c0_69 = arith.constant 0 : index
      %c0_70 = arith.constant 0 : index
      %203 = vector.load %arg19[%c0_69, %c0_70] : memref<16x32xf32, #tpu.memory_space<vmem>>, vector<16x32xf32>
      tpu.vector_store %arg19[%c0_69, %c0_70], %202 {strides = array<i32>} : memref<16x32xf32, #tpu.memory_space<vmem>>, vector<16x32xf32>,
    } else {
    }
    %c0 = arith.constant 0 : index
    %c0_1 = arith.constant 0 : index
    %3 = vector.load %arg19[%c0, %c0_1] : memref<16x32xf32, #tpu.memory_space<vmem>>, vector<16x32xf32>
    %c0_2 = arith.constant 0 : index
    %c0_3 = arith.constant 0 : index
    %c0_4 = arith.constant 0 : index
    %4 = vector.load %arg15[%c0_2, %c0_3, %c0_4] : memref<1x10x32xf32, #tpu.memory_space<vmem>>, vector<1x10x32xf32>
    %5 = vector.shape_cast %4 : vector<1x10x32xf32> to vector<10x32xf32>
    %6 = tpu.iota {dimensions = array<i32: 0>} : vector<8x8xi32>
    %7 = tpu.iota {dimensions = array<i32: 1>} : vector<8x8xi32>
    %8 = arith.cmpi sle, %7, %6 : vector<8x8xi32>
    %cst = arith.constant 0.000000e+00 : f32
    %cst_5 = arith.constant -1.000000e+30 : f32
    %9 = vector.broadcast %cst : f32 to vector<8x8xf32>
    %10 = vector.broadcast %cst_5 : f32 to vector<8x8xf32>
    %11 = arith.select %8, %9, %10 : vector<8x8xi1>, vector<8x8xf32>
    %12 = vector.shape_cast %11 : vector<8x8xf32> to vector<1x8x8xf32>
    %13 = vector.shape_cast %12 : vector<1x8x8xf32> to vector<1x8x8xf32>
    %14 = vector.broadcast %13 : vector<1x8x8xf32> to vector<2x8x8xf32>
    %15 = vector.extract_strided_slice %5 {offsets = [0, 0], sizes = [1, 32], strides = [1, 1]} : vector<10x32xf32> to vector<1x32xf32>
    %16 = vector.shape_cast %15 : vector<1x32xf32> to vector<32xf32>
    %17 = vector.extract_strided_slice %5 {offsets = [1, 0], sizes = [1, 32], strides = [1, 1]} : vector<10x32xf32> to vector<1x32xf32>
    %18 = vector.shape_cast %17 : vector<1x32xf32> to vector<32xf32>
    %cst_6 = arith.constant dense<0.000000e+00> : vector<16xf32>
    %19 = vector.multi_reduction <add>, %3, %cst_6 [1] : vector<16x32xf32> to vector<16xf32>
    %20 = vector.shape_cast %19 : vector<16xf32> to vector<16x1xf32>
    %cst_7 = arith.constant 3.200000e+01 : f32
    %21 = vector.broadcast %cst_7 : f32 to vector<16x1xf32>
    %22 = arith.divf %20, %21 : vector<16x1xf32>
    %23 = vector.broadcast %22 : vector<16x1xf32> to vector<16x32xf32>
    %24 = arith.subf %3, %23 : vector<16x32xf32>
    %25 = arith.mulf %24, %24 : vector<16x32xf32>
    %cst_8 = arith.constant dense<0.000000e+00> : vector<16xf32>
    %26 = vector.multi_reduction <add>, %25, %cst_8 [1] : vector<16x32xf32> to vector<16xf32>
    %27 = vector.shape_cast %26 : vector<16xf32> to vector<16x1xf32>
    %cst_9 = arith.constant 3.200000e+01 : f32
    %28 = vector.broadcast %cst_9 : f32 to vector<16x1xf32>
    %29 = arith.divf %27, %28 : vector<16x1xf32>
    %30 = vector.broadcast %22 : vector<16x1xf32> to vector<16x32xf32>
    %31 = arith.subf %3, %30 : vector<16x32xf32>
    %cst_10 = arith.constant 9.99999993E-9 : f32
    %32 = vector.broadcast %cst_10 : f32 to vector<16x1xf32>
    %33 = arith.addf %29, %32 : vector<16x1xf32>
    %34 = math.rsqrt %33 : vector<16x1xf32>
    %35 = vector.broadcast %34 : vector<16x1xf32> to vector<16x32xf32>
    %36 = arith.mulf %31, %35 : vector<16x32xf32>
    %37 = vector.shape_cast %16 : vector<32xf32> to vector<1x32xf32>
    %38 = vector.broadcast %37 : vector<1x32xf32> to vector<16x32xf32>
    %39 = arith.mulf %36, %38 : vector<16x32xf32>
    %40 = vector.shape_cast %18 : vector<32xf32> to vector<1x32xf32>
    %41 = vector.broadcast %40 : vector<1x32xf32> to vector<16x32xf32>
    %42 = arith.addf %39, %41 : vector<16x32xf32>
    %43 = arith.truncf %42 : vector<16x32xf32> to vector<16x32xbf16>
    %44 = arith.truncf %3 : vector<16x32xf32> to vector<16x32xbf16>
    %c0_11 = arith.constant 0 : index
    %c0_12 = arith.constant 0 : index
    %c0_13 = arith.constant 0 : index
    %45 = vector.load %arg10[%c0_11, %c0_12, %c0_13] : memref<1x32x32xbf16, #tpu.memory_space<vmem>>, vector<1x32x32xbf16>
    %46 = vector.shape_cast %45 : vector<1x32x32xbf16> to vector<32x32xbf16>
    %cst_14 = arith.constant dense<0.000000e+00> : vector<16x32xf32>
    %47 = tpu.matmul %43, %46, %cst_14 {dimension_numbers = #tpu.dot_dimension_numbers<[1], [1], [0], [0], [0, 0, 1, 0], [], []>} : vector<16x32xbf16>, vector<32x32xbf16>, vector<16x32xf32> -> vector<16x32xf32>
    %48 = vector.extract_strided_slice %5 {offsets = [2, 0], sizes = [1, 32], strides = [1, 1]} : vector<10x32xf32> to vector<1x32xf32>
    %49 = vector.shape_cast %48 : vector<1x32xf32> to vector<32xf32>
    %50 = vector.shape_cast %49 : vector<32xf32> to vector<1x32xf32>
    %51 = vector.broadcast %50 : vector<1x32xf32> to vector<16x32xf32>
    %52 = arith.addf %47, %51 : vector<16x32xf32>
    %53 = vector.shape_cast %52 : vector<16x32xf32> to vector<2x8x32xf32>
    %c0_15 = arith.constant 0 : index
    %c0_16 = arith.constant 0 : index
    %c0_17 = arith.constant 0 : index
    %54 = vector.load %arg11[%c0_15, %c0_16, %c0_17] : memref<1x64x32xbf16, #tpu.memory_space<vmem>>, vector<1x64x32xbf16>
    %55 = vector.shape_cast %54 : vector<1x64x32xbf16> to vector<64x32xbf16>
    %cst_18 = arith.constant dense<0.000000e+00> : vector<16x64xf32>
    %56 = tpu.matmul %44, %55, %cst_18 {dimension_numbers = #tpu.dot_dimension_numbers<[1], [1], [0], [0], [0, 0, 1, 0], [], []>} : vector<16x32xbf16>, vector<64x32xbf16>, vector<16x64xf32> -> vector<16x64xf32>
    %57 = vector.extract_strided_slice %56 {offsets = [0, 0], sizes = [16, 32], strides = [1, 1]} : vector<16x64xf32> to vector<16x32xf32>
    %58 = vector.extract_strided_slice %5 {offsets = [3, 0], sizes = [1, 32], strides = [1, 1]} : vector<10x32xf32> to vector<1x32xf32>
    %59 = vector.shape_cast %58 : vector<1x32xf32> to vector<32xf32>
    %60 = vector.shape_cast %59 : vector<32xf32> to vector<1x32xf32>
    %61 = vector.broadcast %60 : vector<1x32xf32> to vector<16x32xf32>
    %62 = arith.addf %57, %61 : vector<16x32xf32>
    %63 = vector.shape_cast %62 : vector<16x32xf32> to vector<2x8x32xf32>
    %64 = vector.extract_strided_slice %56 {offsets = [0, 32], sizes = [16, 32], strides = [1, 1]} : vector<16x64xf32> to vector<16x32xf32>
    %65 = vector.extract_strided_slice %5 {offsets = [4, 0], sizes = [1, 32], strides = [1, 1]} : vector<10x32xf32> to vector<1x32xf32>
    %66 = vector.shape_cast %65 : vector<1x32xf32> to vector<32xf32>
    %67 = vector.shape_cast %66 : vector<32xf32> to vector<1x32xf32>
    %68 = vector.broadcast %67 : vector<1x32xf32> to vector<16x32xf32>
    %69 = arith.addf %64, %68 : vector<16x32xf32>
    %70 = vector.shape_cast %69 : vector<16x32xf32> to vector<2x8x32xf32>
    %cst_19 = arith.constant 0.000000e+00 : f32
    %71 = vector.broadcast %cst_19 : f32 to vector<16x32xf32>
    %72 = vector.extract_strided_slice %53 {offsets = [0, 0, 0], sizes = [2, 8, 16], strides = [1, 1, 1]} : vector<2x8x32xf32> to vector<2x8x16xf32>
    %73 = arith.truncf %72 : vector<2x8x16xf32> to vector<2x8x16xbf16>
    %74 = vector.extract_strided_slice %63 {offsets = [0, 0, 0], sizes = [2, 8, 16], strides = [1, 1, 1]} : vector<2x8x32xf32> to vector<2x8x16xf32>
    %75 = arith.truncf %74 : vector<2x8x16xf32> to vector<2x8x16xbf16>
    %76 = vector.extract_strided_slice %70 {offsets = [0, 0, 0], sizes = [2, 8, 16], strides = [1, 1, 1]} : vector<2x8x32xf32> to vector<2x8x16xf32>
    %77 = arith.truncf %76 : vector<2x8x16xf32> to vector<2x8x16xbf16>
    "tpu.trace_start"() <{level = 10 : i32, message = "bqd,bkd->bqk"}> : () -> ()
    %cst_20 = arith.constant dense<0.000000e+00> : vector<2x8x8xf32>
    %78 = tpu.matmul %73, %75, %cst_20 {dimension_numbers = #tpu.dot_dimension_numbers<[2], [2], [1], [1], [0, 0, 0, 1, 1, 1], [0], [0]>} : vector<2x8x16xbf16>, vector<2x8x16xbf16>, vector<2x8x8xf32> -> vector<2x8x8xf32>
    "tpu.trace_stop"() : () -> ()
    %cst_21 = arith.constant 2.500000e-01 : f32
    %79 = vector.broadcast %cst_21 : f32 to vector<2x8x8xf32>
    %80 = arith.mulf %78, %79 : vector<2x8x8xf32>
    %81 = arith.addf %80, %14 : vector<2x8x8xf32>
    %cst_22 = arith.constant dense<0xFF800000> : vector<2x8xf32>
    %82 = vector.multi_reduction <maximumf>, %81, %cst_22 [2] : vector<2x8x8xf32> to vector<2x8xf32>
    %83 = vector.shape_cast %82 : vector<2x8xf32> to vector<2x8x1xf32>
    %84 = vector.broadcast %83 : vector<2x8x1xf32> to vector<2x8x8xf32>
    %85 = arith.subf %81, %84 : vector<2x8x8xf32>
    %86 = math.exp %85 : vector<2x8x8xf32>
    %cst_23 = arith.constant dense<0.000000e+00> : vector<2x8xf32>
    %87 = vector.multi_reduction <add>, %86, %cst_23 [2] : vector<2x8x8xf32> to vector<2x8xf32>
    %88 = vector.shape_cast %87 : vector<2x8xf32> to vector<2x8x1xf32>
    %89 = tpu.reciprocal %88 {approx = true} : vector<2x8x1xf32> -> vector<2x8x1xf32>
    %90 = vector.broadcast %89 : vector<2x8x1xf32> to vector<2x8x8xf32>
    %91 = arith.mulf %86, %90 : vector<2x8x8xf32>
    %92 = arith.truncf %91 : vector<2x8x8xf32> to vector<2x8x8xbf16>
    "tpu.trace_start"() <{level = 10 : i32, message = "bqk,bkd->bqd"}> : () -> ()
    %cst_24 = arith.constant dense<0.000000e+00> : vector<2x8x16xf32>
    %93 = tpu.matmul %92, %77, %cst_24 {dimension_numbers = #tpu.dot_dimension_numbers<[2], [1], [1], [2], [0, 0, 0, 1, 1, 2], [0], [0]>} : vector<2x8x8xbf16>, vector<2x8x16xbf16>, vector<2x8x16xf32> -> vector<2x8x16xf32>
    "tpu.trace_stop"() : () -> ()
    %94 = vector.shape_cast %93 : vector<2x8x16xf32> to vector<16x16xf32>
    %95 = arith.truncf %94 : vector<16x16xf32> to vector<16x16xbf16>
    %c0_25 = arith.constant 0 : index
    %c0_26 = arith.constant 0 : index
    %c0_27 = arith.constant 0 : index
    %c0_28 = arith.constant 0 : index
    %96 = vector.load %arg12[%c0_25, %c0_26, %c0_27, %c0_28] : memref<1x2x16x32xbf16, #tpu.memory_space<vmem>>, vector<1x1x16x32xbf16>
    %97 = vector.shape_cast %96 : vector<1x1x16x32xbf16> to vector<16x32xbf16>
    %cst_29 = arith.constant dense<0.000000e+00> : vector<16x32xf32>
    %98 = tpu.matmul %95, %97, %cst_29 {dimension_numbers = #tpu.dot_dimension_numbers<[1], [0], [0], [1], [0, 0, 1, 1], [], []>} : vector<16x16xbf16>, vector<16x32xbf16>, vector<16x32xf32> -> vector<16x32xf32>
    %99 = arith.addf %71, %98 : vector<16x32xf32>
    %100 = vector.extract_strided_slice %53 {offsets = [0, 0, 16], sizes = [2, 8, 16], strides = [1, 1, 1]} : vector<2x8x32xf32> to vector<2x8x16xf32>
    %101 = arith.truncf %100 : vector<2x8x16xf32> to vector<2x8x16xbf16>
    %102 = vector.extract_strided_slice %63 {offsets = [0, 0, 16], sizes = [2, 8, 16], strides = [1, 1, 1]} : vector<2x8x32xf32> to vector<2x8x16xf32>
    %103 = arith.truncf %102 : vector<2x8x16xf32> to vector<2x8x16xbf16>
    %104 = vector.extract_strided_slice %70 {offsets = [0, 0, 16], sizes = [2, 8, 16], strides = [1, 1, 1]} : vector<2x8x32xf32> to vector<2x8x16xf32>
    %105 = arith.truncf %104 : vector<2x8x16xf32> to vector<2x8x16xbf16>
    "tpu.trace_start"() <{level = 10 : i32, message = "bqd,bkd->bqk"}> : () -> ()
    %cst_30 = arith.constant dense<0.000000e+00> : vector<2x8x8xf32>
    %106 = tpu.matmul %101, %103, %cst_30 {dimension_numbers = #tpu.dot_dimension_numbers<[2], [2], [1], [1], [0, 0, 0, 1, 1, 1], [0], [0]>} : vector<2x8x16xbf16>, vector<2x8x16xbf16>, vector<2x8x8xf32> -> vector<2x8x8xf32>
    "tpu.trace_stop"() : () -> ()
    %cst_31 = arith.constant 2.500000e-01 : f32
    %107 = vector.broadcast %cst_31 : f32 to vector<2x8x8xf32>
    %108 = arith.mulf %106, %107 : vector<2x8x8xf32>
    %109 = arith.addf %108, %14 : vector<2x8x8xf32>
    %cst_32 = arith.constant dense<0xFF800000> : vector<2x8xf32>
    %110 = vector.multi_reduction <maximumf>, %109, %cst_32 [2] : vector<2x8x8xf32> to vector<2x8xf32>
    %111 = vector.shape_cast %110 : vector<2x8xf32> to vector<2x8x1xf32>
    %112 = vector.broadcast %111 : vector<2x8x1xf32> to vector<2x8x8xf32>
    %113 = arith.subf %109, %112 : vector<2x8x8xf32>
    %114 = math.exp %113 : vector<2x8x8xf32>
    %cst_33 = arith.constant dense<0.000000e+00> : vector<2x8xf32>
    %115 = vector.multi_reduction <add>, %114, %cst_33 [2] : vector<2x8x8xf32> to vector<2x8xf32>
    %116 = vector.shape_cast %115 : vector<2x8xf32> to vector<2x8x1xf32>
    %117 = tpu.reciprocal %116 {approx = true} : vector<2x8x1xf32> -> vector<2x8x1xf32>
    %118 = vector.broadcast %117 : vector<2x8x1xf32> to vector<2x8x8xf32>
    %119 = arith.mulf %114, %118 : vector<2x8x8xf32>
    %120 = arith.truncf %119 : vector<2x8x8xf32> to vector<2x8x8xbf16>
    "tpu.trace_start"() <{level = 10 : i32, message = "bqk,bkd->bqd"}> : () -> ()
    %cst_34 = arith.constant dense<0.000000e+00> : vector<2x8x16xf32>
    %121 = tpu.matmul %120, %105, %cst_34 {dimension_numbers = #tpu.dot_dimension_numbers<[2], [1], [1], [2], [0, 0, 0, 1, 1, 2], [0], [0]>} : vector<2x8x8xbf16>, vector<2x8x16xbf16>, vector<2x8x16xf32> -> vector<2x8x16xf32>
    "tpu.trace_stop"() : () -> ()
    %122 = vector.shape_cast %121 : vector<2x8x16xf32> to vector<16x16xf32>
    %123 = arith.truncf %122 : vector<16x16xf32> to vector<16x16xbf16>
    %c0_35 = arith.constant 0 : index
    %c1 = arith.constant 1 : index
    %c0_36 = arith.constant 0 : index
    %c0_37 = arith.constant 0 : index
    %124 = vector.load %arg12[%c0_35, %c1, %c0_36, %c0_37] : memref<1x2x16x32xbf16, #tpu.memory_space<vmem>>, vector<1x1x16x32xbf16>
    %125 = vector.shape_cast %124 : vector<1x1x16x32xbf16> to vector<16x32xbf16>
    %cst_38 = arith.constant dense<0.000000e+00> : vector<16x32xf32>
    %126 = tpu.matmul %123, %125, %cst_38 {dimension_numbers = #tpu.dot_dimension_numbers<[1], [0], [0], [1], [0, 0, 1, 1], [], []>} : vector<16x16xbf16>, vector<16x32xbf16>, vector<16x32xf32> -> vector<16x32xf32>
    %127 = arith.addf %99, %126 : vector<16x32xf32>
    %128 = vector.extract_strided_slice %5 {offsets = [5, 0], sizes = [1, 32], strides = [1, 1]} : vector<10x32xf32> to vector<1x32xf32>
    %129 = vector.shape_cast %128 : vector<1x32xf32> to vector<32xf32>
    %130 = vector.shape_cast %129 : vector<32xf32> to vector<1x32xf32>
    %131 = vector.broadcast %130 : vector<1x32xf32> to vector<16x32xf32>
    %132 = arith.addf %127, %131 : vector<16x32xf32>
    %133 = arith.addf %42, %132 : vector<16x32xf32>
    %134 = vector.extract_strided_slice %5 {offsets = [6, 0], sizes = [1, 32], strides = [1, 1]} : vector<10x32xf32> to vector<1x32xf32>
    %135 = vector.shape_cast %134 : vector<1x32xf32> to vector<32xf32>
    %136 = vector.extract_strided_slice %5 {offsets = [7, 0], sizes = [1, 32], strides = [1, 1]} : vector<10x32xf32> to vector<1x32xf32>
    %137 = vector.shape_cast %136 : vector<1x32xf32> to vector<32xf32>
    %cst_39 = arith.constant dense<0.000000e+00> : vector<16xf32>
    %138 = vector.multi_reduction <add>, %133, %cst_39 [1] : vector<16x32xf32> to vector<16xf32>
    %139 = vector.shape_cast %138 : vector<16xf32> to vector<16x1xf32>
    %cst_40 = arith.constant 3.200000e+01 : f32
    %140 = vector.broadcast %cst_40 : f32 to vector<16x1xf32>
    %141 = arith.divf %139, %140 : vector<16x1xf32>
    %142 = vector.broadcast %141 : vector<16x1xf32> to vector<16x32xf32>
    %143 = arith.subf %133, %142 : vector<16x32xf32>
    %144 = arith.mulf %143, %143 : vector<16x32xf32>
    %cst_41 = arith.constant dense<0.000000e+00> : vector<16xf32>
    %145 = vector.multi_reduction <add>, %144, %cst_41 [1] : vector<16x32xf32> to vector<16xf32>
    %146 = vector.shape_cast %145 : vector<16xf32> to vector<16x1xf32>
    %cst_42 = arith.constant 3.200000e+01 : f32
    %147 = vector.broadcast %cst_42 : f32 to vector<16x1xf32>
    %148 = arith.divf %146, %147 : vector<16x1xf32>
    %149 = vector.broadcast %141 : vector<16x1xf32> to vector<16x32xf32>
    %150 = arith.subf %133, %149 : vector<16x32xf32>
    %cst_43 = arith.constant 9.99999993E-9 : f32
    %151 = vector.broadcast %cst_43 : f32 to vector<16x1xf32>
    %152 = arith.addf %148, %151 : vector<16x1xf32>
    %153 = math.rsqrt %152 : vector<16x1xf32>
    %154 = vector.broadcast %153 : vector<16x1xf32> to vector<16x32xf32>
    %155 = arith.mulf %150, %154 : vector<16x32xf32>
    %156 = vector.shape_cast %135 : vector<32xf32> to vector<1x32xf32>
    %157 = vector.broadcast %156 : vector<1x32xf32> to vector<16x32xf32>
    %158 = arith.mulf %155, %157 : vector<16x32xf32>
    %159 = vector.shape_cast %137 : vector<32xf32> to vector<1x32xf32>
    %160 = vector.broadcast %159 : vector<1x32xf32> to vector<16x32xf32>
    %161 = arith.addf %158, %160 : vector<16x32xf32>
    %162 = arith.truncf %161 : vector<16x32xf32> to vector<16x32xbf16>
    %c0_44 = arith.constant 0 : index
    %c0_45 = arith.constant 0 : index
    %c0_46 = arith.constant 0 : index
    %163 = vector.load %arg13[%c0_44, %c0_45, %c0_46] : memref<1x32x32xbf16, #tpu.memory_space<vmem>>, vector<1x32x32xbf16>
    %164 = vector.shape_cast %163 : vector<1x32x32xbf16> to vector<32x32xbf16>
    %cst_47 = arith.constant dense<0.000000e+00> : vector<16x32xf32>
    %165 = tpu.matmul %162, %164, %cst_47 {dimension_numbers = #tpu.dot_dimension_numbers<[1], [1], [0], [0], [0, 0, 1, 0], [], []>} : vector<16x32xbf16>, vector<32x32xbf16>, vector<16x32xf32> -> vector<16x32xf32>
    %166 = vector.extract_strided_slice %5 {offsets = [8, 0], sizes = [1, 32], strides = [1, 1]} : vector<10x32xf32> to vector<1x32xf32>
    %167 = vector.shape_cast %166 : vector<1x32xf32> to vector<32xf32>
    %168 = vector.shape_cast %167 : vector<32xf32> to vector<1x32xf32>
    %169 = vector.broadcast %168 : vector<1x32xf32> to vector<16x32xf32>
    %170 = arith.addf %165, %169 : vector<16x32xf32>
    %cst_48 = arith.constant 0.000000e+00 : f32
    %171 = vector.broadcast %cst_48 : f32 to vector<16x32xf32>
    %172 = arith.maximumf %170, %171 : vector<16x32xf32>
    %173 = arith.truncf %172 : vector<16x32xf32> to vector<16x32xbf16>
    %c0_49 = arith.constant 0 : index
    %c0_50 = arith.constant 0 : index
    %c0_51 = arith.constant 0 : index
    %174 = vector.load %arg14[%c0_49, %c0_50, %c0_51] : memref<1x32x32xbf16, #tpu.memory_space<vmem>>, vector<1x32x32xbf16>
    %175 = vector.shape_cast %174 : vector<1x32x32xbf16> to vector<32x32xbf16>
    %cst_52 = arith.constant dense<0.000000e+00> : vector<16x32xf32>
    %176 = tpu.matmul %173, %175, %cst_52 {dimension_numbers = #tpu.dot_dimension_numbers<[1], [1], [0], [0], [0, 0, 1, 0], [], []>} : vector<16x32xbf16>, vector<32x32xbf16>, vector<16x32xf32> -> vector<16x32xf32>
    %177 = vector.extract_strided_slice %5 {offsets = [9, 0], sizes = [1, 32], strides = [1, 1]} : vector<10x32xf32> to vector<1x32xf32>
    %178 = vector.shape_cast %177 : vector<1x32xf32> to vector<32xf32>
    %179 = vector.shape_cast %178 : vector<32xf32> to vector<1x32xf32>
    %180 = vector.broadcast %179 : vector<1x32xf32> to vector<16x32xf32>
    %181 = arith.addf %176, %180 : vector<16x32xf32>
    %182 = arith.addf %181, %161 : vector<16x32xf32>
    %c1_i32 = arith.constant 1 : i32
    %183 = arith.cmpi ne, %arg1, %c1_i32 : i32
    %184 = arith.extui %183 : i1 to i32
    %c0_i32_53 = arith.constant 0 : i32
    %185 = arith.cmpi ne, %184, %c0_i32_53 : i32
    scf.if %185 {
      %c0_56 = arith.constant 0 : index
      %c0_57 = arith.constant 0 : index
      %189 = vector.load %arg19[%c0_56, %c0_57] : memref<16x32xf32, #tpu.memory_space<vmem>>, vector<16x32xf32>
      tpu.vector_store %arg19[%c0_56, %c0_57], %182 {strides = array<i32>} : memref<16x32xf32, #tpu.memory_space<vmem>>, vector<16x32xf32>,
    } else {
    }
    %c1_i32_54 = arith.constant 1 : i32
    %186 = arith.cmpi eq, %arg1, %c1_i32_54 : i32
    %187 = arith.extui %186 : i1 to i32
    %c0_i32_55 = arith.constant 0 : i32
    %188 = arith.cmpi ne, %187, %c0_i32_55 : i32
    scf.if %188 {
      %c0_56 = arith.constant 0 : index
      %c0_57 = arith.constant 0 : index
      %189 = vector.load %arg16[%c0_56, %c0_57] : memref<2x32xf32, #tpu.memory_space<vmem>>, vector<1x32xf32>
      %190 = vector.shape_cast %189 : vector<1x32xf32> to vector<32xf32>
      %c1_58 = arith.constant 1 : index
      %c0_59 = arith.constant 0 : index
      %191 = vector.load %arg16[%c1_58, %c0_59] : memref<2x32xf32, #tpu.memory_space<vmem>>, vector<1x32xf32>
      %192 = vector.shape_cast %191 : vector<1x32xf32> to vector<32xf32>
      %cst_60 = arith.constant dense<0.000000e+00> : vector<16xf32>
      %193 = vector.multi_reduction <add>, %182, %cst_60 [1] : vector<16x32xf32> to vector<16xf32>
      %194 = vector.shape_cast %193 : vector<16xf32> to vector<16x1xf32>
      %cst_61 = arith.constant 3.200000e+01 : f32
      %195 = vector.broadcast %cst_61 : f32 to vector<16x1xf32>
      %196 = arith.divf %194, %195 : vector<16x1xf32>
      %197 = vector.broadcast %196 : vector<16x1xf32> to vector<16x32xf32>
      %198 = arith.subf %182, %197 : vector<16x32xf32>
      %199 = arith.mulf %198, %198 : vector<16x32xf32>
      %cst_62 = arith.constant dense<0.000000e+00> : vector<16xf32>
      %200 = vector.multi_reduction <add>, %199, %cst_62 [1] : vector<16x32xf32> to vector<16xf32>
      %201 = vector.shape_cast %200 : vector<16xf32> to vector<16x1xf32>
      %cst_63 = arith.constant 3.200000e+01 : f32
      %202 = vector.broadcast %cst_63 : f32 to vector<16x1xf32>
      %203 = arith.divf %201, %202 : vector<16x1xf32>
      %204 = vector.broadcast %196 : vector<16x1xf32> to vector<16x32xf32>
      %205 = arith.subf %182, %204 : vector<16x32xf32>
      %cst_64 = arith.constant 9.99999993E-9 : f32
      %206 = vector.broadcast %cst_64 : f32 to vector<16x1xf32>
      %207 = arith.addf %203, %206 : vector<16x1xf32>
      %208 = math.rsqrt %207 : vector<16x1xf32>
      %209 = vector.broadcast %208 : vector<16x1xf32> to vector<16x32xf32>
      %210 = arith.mulf %205, %209 : vector<16x32xf32>
      %211 = vector.shape_cast %190 : vector<32xf32> to vector<1x32xf32>
      %212 = vector.broadcast %211 : vector<1x32xf32> to vector<16x32xf32>
      %213 = arith.mulf %210, %212 : vector<16x32xf32>
      %214 = vector.shape_cast %192 : vector<32xf32> to vector<1x32xf32>
      %215 = vector.broadcast %214 : vector<1x32xf32> to vector<16x32xf32>
      %216 = arith.addf %213, %215 : vector<16x32xf32>
      %217 = vector.shape_cast %216 : vector<16x32xf32> to vector<2x8x32xf32>
      %c0_65 = arith.constant 0 : index
      %c0_66 = arith.constant 0 : index
      %c0_67 = arith.constant 0 : index
      %218 = vector.load %arg5[%c0_65, %c0_66, %c0_67] : memref<2x8x4xbf16, #tpu.memory_space<vmem>>, vector<2x8x4xbf16>
      %219 = vector.shape_cast %218 : vector<2x8x4xbf16> to vector<16x4xbf16>
      %c0_68 = arith.constant 0 : index
      %c0_69 = arith.constant 0 : index
      %220 = vector.load %arg9[%c0_68, %c0_69] : memref<4x32xbf16, #tpu.memory_space<vmem>>, vector<4x32xbf16>
      %cst_70 = arith.constant dense<0.000000e+00> : vector<16x32xf32>
      %221 = tpu.matmul %219, %220, %cst_70 {dimension_numbers = #tpu.dot_dimension_numbers<[1], [0], [0], [1], [0, 0, 1, 1], [], []>} : vector<16x4xbf16>, vector<4x32xbf16>, vector<16x32xf32> -> vector<16x32xf32>
      %c0_71 = arith.constant 0 : index
      %c0_72 = arith.constant 0 : index
      %c0_73 = arith.constant 0 : index
      %222 = vector.load %arg6[%c0_71, %c0_72, %c0_73] : memref<2x8x32xbf16, #tpu.memory_space<vmem>>, vector<2x8x32xbf16>
      %223 = vector.shape_cast %222 : vector<2x8x32xbf16> to vector<16x32xbf16>
      %224 = arith.extf %223 : vector<16x32xbf16> to vector<16x32xf32>
      %225 = arith.addf %221, %224 : vector<16x32xf32>
      %226 = vector.shape_cast %225 : vector<16x32xf32> to vector<2x8x32xf32>
      %c0_74 = arith.constant 0 : index
      %c0_75 = arith.constant 0 : index
      %c0_76 = arith.constant 0 : index
      %227 = vector.load %arg7[%c0_74, %c0_75, %c0_76] : memref<2x8x4xbf16, #tpu.memory_space<vmem>>, vector<2x8x4xbf16>
      %228 = vector.shape_cast %227 : vector<2x8x4xbf16> to vector<16x4xbf16>
      %c0_77 = arith.constant 0 : index
      %c0_78 = arith.constant 0 : index
      %229 = vector.load %arg9[%c0_77, %c0_78] : memref<4x32xbf16, #tpu.memory_space<vmem>>, vector<4x32xbf16>
      %cst_79 = arith.constant dense<0.000000e+00> : vector<16x32xf32>
      %230 = tpu.matmul %228, %229, %cst_79 {dimension_numbers = #tpu.dot_dimension_numbers<[1], [0], [0], [1], [0, 0, 1, 1], [], []>} : vector<16x4xbf16>, vector<4x32xbf16>, vector<16x32xf32> -> vector<16x32xf32>
      %c0_80 = arith.constant 0 : index
      %c0_81 = arith.constant 0 : index
      %c0_82 = arith.constant 0 : index
      %231 = vector.load %arg8[%c0_80, %c0_81, %c0_82] : memref<2x8x32xbf16, #tpu.memory_space<vmem>>, vector<2x8x32xbf16>
      %232 = vector.shape_cast %231 : vector<2x8x32xbf16> to vector<16x32xbf16>
      %233 = arith.extf %232 : vector<16x32xbf16> to vector<16x32xf32>
      %234 = arith.addf %230, %233 : vector<16x32xf32>
      %235 = vector.shape_cast %234 : vector<16x32xf32> to vector<2x8x32xf32>
      %236 = arith.mulf %217, %226 : vector<2x8x32xf32>
      %cst_83 = arith.constant dense<0.000000e+00> : vector<2x8xf32>
      %237 = vector.multi_reduction <add>, %236, %cst_83 [2] : vector<2x8x32xf32> to vector<2x8xf32>
      %c0_84 = arith.constant 0 : index
      %c0_85 = arith.constant 0 : index
      %238 = vector.load %arg17[%c0_84, %c0_85] : memref<2x8xf32, #tpu.memory_space<vmem>>, vector<2x8xf32>
      tpu.vector_store %arg17[%c0_84, %c0_85], %237 {strides = array<i32>} : memref<2x8xf32, #tpu.memory_space<vmem>>, vector<2x8xf32>,
      %239 = arith.mulf %217, %235 : vector<2x8x32xf32>
      %cst_86 = arith.constant dense<0.000000e+00> : vector<2x8xf32>
      %240 = vector.multi_reduction <add>, %239, %cst_86 [2] : vector<2x8x32xf32> to vector<2x8xf32>
      %c0_87 = arith.constant 0 : index
      %c0_88 = arith.constant 0 : index
      %241 = vector.load %arg18[%c0_87, %c0_88] : memref<2x8xf32, #tpu.memory_space<vmem>>, vector<2x8xf32>
      tpu.vector_store %arg18[%c0_87, %c0_88], %240 {strides = array<i32>} : memref<2x8xf32, #tpu.memory_space<vmem>>, vector<2x8xf32>,
    } else {
    }
    return
  }
  func.func @transform_0(%arg0: i32, %arg1: i32) -> (i32, i32, i32) {
    %c0_i32 = arith.constant 0 : i32
    %c0_i32_0 = arith.constant 0 : i32
    %c0_i32_1 = arith.constant 0 : i32
    return %arg0, %c0_i32, %c0_i32_0 : i32, i32, i32
  }
  func.func @transform_1(%arg0: i32, %arg1: i32) -> (i32, i32, i32) {
    %c0_i32 = arith.constant 0 : i32
    %c0_i32_0 = arith.constant 0 : i32
    %c0_i32_1 = arith.constant 0 : i32
    return %arg0, %c0_i32, %c0_i32_0 : i32, i32, i32
  }
  func.func @transform_2(%arg0: i32, %arg1: i32) -> (i32, i32, i32) {
    %c0_i32 = arith.constant 0 : i32
    %c0_i32_0 = arith.constant 0 : i32
    %c0_i32_1 = arith.constant 0 : i32
    return %arg0, %c0_i32, %c0_i32_0 : i32, i32, i32
  }
  func.func @transform_3(%arg0: i32, %arg1: i32) -> (i32, i32, i32) {
    %c0_i32 = arith.constant 0 : i32
    %c0_i32_0 = arith.constant 0 : i32
    %c0_i32_1 = arith.constant 0 : i32
    return %arg0, %c0_i32, %c0_i32_0 : i32, i32, i32
  }
  func.func @transform_4(%arg0: i32, %arg1: i32) -> (i32, i32, i32) {
    %c0_i32 = arith.constant 0 : i32
    %c0_i32_0 = arith.constant 0 : i32
    %c0_i32_1 = arith.constant 0 : i32
    return %arg0, %c0_i32, %c0_i32_0 : i32, i32, i32
  }
  func.func @transform_5(%arg0: i32, %arg1: i32) -> (i32, i32, i32) {
    %c0_i32 = arith.constant 0 : i32
    %c0_i32_0 = arith.constant 0 : i32
    %c0_i32_1 = arith.constant 0 : i32
    return %arg0, %c0_i32, %c0_i32_0 : i32, i32, i32
  }
  func.func @transform_6(%arg0: i32, %arg1: i32) -> (i32, i32, i32) {
    %c0_i32 = arith.constant 0 : i32
    %c0_i32_0 = arith.constant 0 : i32
    %c0_i32_1 = arith.constant 0 : i32
    return %arg0, %c0_i32, %c0_i32_0 : i32, i32, i32
  }
  func.func @transform_7(%arg0: i32, %arg1: i32) -> (i32, i32) {
    %c0_i32 = arith.constant 0 : i32
    %c0_i32_0 = arith.constant 0 : i32
    %c0_i32_1 = arith.constant 0 : i32
    return %c0_i32, %c0_i32_0 : i32, i32
  }
  func.func @transform_8(%arg0: i32, %arg1: i32) -> (i32, i32, i32) {
    %c0_i32 = arith.constant 0 : i32
    %c0_i32_0 = arith.constant 0 : i32
    %c0_i32_1 = arith.constant 0 : i32
    return %arg1, %c0_i32, %c0_i32_0 : i32, i32, i32
  }
  func.func @transform_9(%arg0: i32, %arg1: i32) -> (i32, i32, i32) {
    %c0_i32 = arith.constant 0 : i32
    %c0_i32_0 = arith.constant 0 : i32
    %c0_i32_1 = arith.constant 0 : i32
    return %arg1, %c0_i32, %c0_i32_0 : i32, i32, i32
  }
  func.func @transform_10(%arg0: i32, %arg1: i32) -> (i32, i32, i32, i32) {
    %c0_i32 = arith.constant 0 : i32
    %c0_i32_0 = arith.constant 0 : i32
    %c0_i32_1 = arith.constant 0 : i32
    %c0_i32_2 = arith.constant 0 : i32
    return %arg1, %c0_i32, %c0_i32_0, %c0_i32_1 : i32, i32, i32, i32
  }
  func.func @transform_11(%arg0: i32, %arg1: i32) -> (i32, i32, i32) {
    %c0_i32 = arith.constant 0 : i32
    %c0_i32_0 = arith.constant 0 : i32
    %c0_i32_1 = arith.constant 0 : i32
    return %arg1, %c0_i32, %c0_i32_0 : i32, i32, i32
  }
  func.func @transform_12(%arg0: i32, %arg1: i32) -> (i32, i32, i32) {
    %c0_i32 = arith.constant 0 : i32
    %c0_i32_0 = arith.constant 0 : i32
    %c0_i32_1 = arith.constant 0 : i32
    return %arg1, %c0_i32, %c0_i32_0 : i32, i32, i32
  }
  func.func @transform_13(%arg0: i32, %arg1: i32) -> (i32, i32, i32) {
    %c0_i32 = arith.constant 0 : i32
    %c0_i32_0 = arith.constant 0 : i32
    %c0_i32_1 = arith.constant 0 : i32
    return %arg1, %c0_i32, %c0_i32_0 : i32, i32, i32
  }
  func.func @transform_14(%arg0: i32, %arg1: i32) -> (i32, i32) {
    %c0_i32 = arith.constant 0 : i32
    %c0_i32_0 = arith.constant 0 : i32
    %c0_i32_1 = arith.constant 0 : i32
    return %c0_i32, %c0_i32_0 : i32, i32
  }
  func.func @transform_15(%arg0: i32, %arg1: i32) -> (i32, i32) {
    %c0_i32 = arith.constant 0 : i32
    %c0_i32_0 = arith.constant 0 : i32
    return %arg0, %c0_i32 : i32, i32
  }
  func.func @transform_16(%arg0: i32, %arg1: i32) -> (i32, i32) {
    %c0_i32 = arith.constant 0 : i32
    %c0_i32_0 = arith.constant 0 : i32
    return %arg0, %c0_i32 : i32, i32
  }
}

</mosaic_0001>

<llo_original>
// kernel: sasrec_colr_forward.1
$region0: #{sasrec_colr_forward.1}
  #allocation0 [shape = 'u32[]', space=smem, size = 0x4, offset = 0x4, fixed_abs, tag = 'smem constant byte address 0x4 - core index']
  #allocation1 [shape = 'u32[144,128]{1,0:T(1,128)}', space=vmem, size = 0x12000, scoped, tag = 'internal scratch']
  #allocation2 [shape = 'f32[16,32]{1,0:T(8,128)}', space=vmem, size = 0x2000, scoped, tag = 'scratch operand']
  %s0 = inlined_call_operand.vmem [shape: bf16[2,8,4], index: 0, kind: input, shape index: {}]
  %s1 = inlined_call_operand.vmem [shape: bf16[2,8,32], index: 1, kind: input, shape index: {}]
  %s2 = inlined_call_operand.vmem [shape: bf16[2,8,32], index: 2, kind: input, shape index: {}]
  %s3 = inlined_call_operand.vmem [shape: bf16[2,8,4], index: 3, kind: input, shape index: {}]
  %s4 = inlined_call_operand.vmem [shape: bf16[2,8,32], index: 4, kind: input, shape index: {}]
  %s5 = inlined_call_operand.vmem [shape: bf16[2,8,4], index: 5, kind: input, shape index: {}]
  %s6 = inlined_call_operand.vmem [shape: bf16[2,8,32], index: 6, kind: input, shape index: {}]
  %s7 = inlined_call_operand.vmem [shape: bf16[4,32], index: 7, kind: input, shape index: {}]
  %s8 = inlined_call_operand.vmem [shape: bf16[2,32,32], index: 8, kind: input, shape index: {}]
  %s9 = inlined_call_operand.vmem [shape: bf16[2,64,32], index: 9, kind: input, shape index: {}]
  %s10 = inlined_call_operand.vmem [shape: bf16[2,2,16,32], index: 10, kind: input, shape index: {}]
  %s11 = inlined_call_operand.vmem [shape: bf16[2,32,32], index: 11, kind: input, shape index: {}]
  %s12 = inlined_call_operand.vmem [shape: bf16[2,32,32], index: 12, kind: input, shape index: {}]
  %s13 = inlined_call_operand.vmem [shape: f32[2,10,32], index: 13, kind: input, shape index: {}]
  %s14 = inlined_call_operand.vmem [shape: f32[2,32], index: 14, kind: input, shape index: {}]
  %s15 = inlined_call_operand.hbm [shape: f32[2,8], index: 15, kind: output, shape index: {0}]
  %s16 = inlined_call_operand.hbm [shape: f32[2,8], index: 16, kind: output, shape index: {1}]
  %17 = xla_tuple %s15, %s16
  %s18 = sld [smem:[#allocation0]]
  $region113: #{sasrec_colr_forward.1} parent=0
    _
  %s20 = ssub.s32 1, %s18
  %s21 = scalar_select 0, %s20, %s18
  $region1: #{sasrec_colr_forward.1} parent=0
    #allocation3 [shape = 'u8[1024]{0}', space=vmem, size = 0x400, scoped, tag = 'output window, operand 0, single buffered']
    #allocation4 [shape = 's32[2]{0}', space=sflag, size = 0x8, scoped, tag = 'scoped memory for sasrec_colr_forward.1']
    #allocation5 [shape = 'u8[1024]{0}', space=vmem, size = 0x400, scoped, tag = 'output window, operand 1, single buffered']
    #allocation6 [shape = 's32[1]{0}', space=sflag, size = 0x4, scoped, tag = 'scoped memory for sasrec_colr_forward.1']
    %22 = vsyncpa [#allocation4], 0
    %23 = vsyncpa [#allocation6], 0
    loop: start=0, step=1, limit=4
    $region2: #{sasrec_colr_forward.1} parent=1 // loop_pre_header
      _
    $region3: #{sasrec_colr_forward.1} parent=1 // loop_header
      %s25 = sphi 0, %s29
      %p26 = scmp.ge.s32.totalorder %s25, 4
      %s32 = sphi 0, %s44
      %s33 = sphi 0, %s40
      %s34 = sphi 0, %s32
      %s35 = sphi 0, %s33
      %s36 = sphi 0, %s34
      %s37 = sphi 0, %s35
      %s47 = sphi 0, %s49
      %s50 = sphi 0, %s47
      %s51 = sphi 0, %s50
      %s67 = sphi 0, %s51
      %s73 = sphi 0, %s75
      %s76 = sphi 0, %s73
      %s77 = sphi 0, %s76
      %s93 = sphi 0, %s77
      %s99 = sphi 0, %s101
      %s102 = sphi 0, %s99
      %s103 = sphi 0, %s102
      %s119 = sphi 0, %s103
      %s125 = sphi 0, %s127
      %s128 = sphi 0, %s125
      %s129 = sphi 0, %s128
      %s145 = sphi 0, %s129
      %s151 = sphi 0, %s153
      %s154 = sphi 0, %s151
      %s155 = sphi 0, %s154
      %s171 = sphi 0, %s155
      %s177 = sphi 0, %s179
      %s180 = sphi 0, %s177
      %s181 = sphi 0, %s180
      %s197 = sphi 0, %s181
      %s203 = sphi 0, %s205
      %s206 = sphi 0, %s203
      %s207 = sphi 0, %s206
      %s223 = sphi 0, %s207
      %s227 = sphi 0, %s227
      %s229 = sphi 0, %s227
      %s230 = sphi 0, %s229
      %s244 = sphi 0, %s230
      %s250 = sphi 0, %s252
      %s253 = sphi 0, %s250
      %s254 = sphi 0, %s253
      %s270 = sphi 0, %s254
      %s276 = sphi 0, %s278
      %s279 = sphi 0, %s276
      %s280 = sphi 0, %s279
      %s296 = sphi 0, %s280
      %s302 = sphi 0, %s304
      %s305 = sphi 0, %s302
      %s306 = sphi 0, %s305
      %s322 = sphi 0, %s306
      %s328 = sphi 0, %s330
      %s331 = sphi 0, %s328
      %s332 = sphi 0, %s331
      %s348 = sphi 0, %s332
      %s354 = sphi 0, %s356
      %s357 = sphi 0, %s354
      %s358 = sphi 0, %s357
      %s374 = sphi 0, %s358
      %s380 = sphi 0, %s382
      %s383 = sphi 0, %s380
      %s384 = sphi 0, %s383
      %s400 = sphi 0, %s384
      %s404 = sphi 0, %s404
      %s406 = sphi 0, %s404
      %s407 = sphi 0, %s406
      %s421 = sphi 0, %s407
      %s427 = sphi 0, %s429
      %s430 = sphi 0, %s427
      %s431 = sphi 0, %s430
      %s447 = sphi 0, %s431
      %s453 = sphi 0, %s455
      %s456 = sphi 0, %s453
      %s457 = sphi 0, %s456
      %s473 = sphi 0, %s457
    $region4: #{sasrec_colr_forward.1} parent=1 // loop_header_branch
      %28 = sbr.rel (%p26) target = $region8
    $region5: #{sasrec_colr_forward.1} parent=1 // loop_body
      %s30 = ssub.s32 %s25, 1
      %s31 = ssub.s32 %s25, 2
      %s38 = sadd.s32 1, %s33
      %p39 = scmp.ge.s32.totalorder %s38, 2
      %s40 = scalar_select %p39, 0, %s38
      %s41 = sadd.s32 1, %s32
      %s42 = scalar_select %p39, %s41, %s32
      %p43 = scmp.ge.s32.totalorder %s42, 1
      %s44 = scalar_select %p43, 0, %s42
      %s45 = ssub.s32 %s32, %s44
      %p46 = scmp.eq.s32.totalorder %s45, 0
      %s48 = sadd.s32 %s47, 1
      %s49 = scalar_select %p46, %s47, %s48
      %p52 = pneg %p46
      %p53 = scmp.eq.s32.totalorder %s25, 1
      %p54 = por %p52, %p53
      %p55 = scmp.ne.s32.totalorder %s47, %s50
      %p56 = scmp.eq.s32.totalorder %s25, 0
      %p57 = por %p55, %p56
      %p58 = scmp.ne.s32.totalorder %s47, %s50
      %p59 = scmp.eq.s32.totalorder %s30, 1
      %p60 = por %p58, %p59
      %p61 = scmp.ne.s32.totalorder %s50, %s51
      %p62 = scmp.eq.s32.totalorder %s30, 0
      %p63 = por %p61, %p62
      %p64 = scmp.ne.s32.totalorder %s50, %s51
      %p65 = scmp.eq.s32.totalorder %s31, 1
      %p66 = por %p64, %p65
      %p68 = scmp.ne.s32.totalorder %s51, %s67
      %p69 = scmp.eq.s32.totalorder %s31, 0
      %p70 = por %p68, %p69
      %s71 = ssub.s32 %s32, %s44
      %p72 = scmp.eq.s32.totalorder %s71, 0
      %s74 = sadd.s32 %s73, 1
      %s75 = scalar_select %p72, %s73, %s74
      %p78 = pneg %p72
      %p79 = scmp.eq.s32.totalorder %s25, 1
      %p80 = por %p78, %p79
      %p81 = scmp.ne.s32.totalorder %s73, %s76
      %p82 = scmp.eq.s32.totalorder %s25, 0
      %p83 = por %p81, %p82
      %p84 = scmp.ne.s32.totalorder %s73, %s76
      %p85 = scmp.eq.s32.totalorder %s30, 1
      %p86 = por %p84, %p85
      %p87 = scmp.ne.s32.totalorder %s76, %s77
      %p88 = scmp.eq.s32.totalorder %s30, 0
      %p89 = por %p87, %p88
      %p90 = scmp.ne.s32.totalorder %s76, %s77
      %p91 = scmp.eq.s32.totalorder %s31, 1
      %p92 = por %p90, %p91
      %p94 = scmp.ne.s32.totalorder %s77, %s93
      %p95 = scmp.eq.s32.totalorder %s31, 0
      %p96 = por %p94, %p95
      %s97 = ssub.s32 %s32, %s44
      %p98 = scmp.eq.s32.totalorder %s97, 0
      %s100 = sadd.s32 %s99, 1
      %s101 = scalar_select %p98, %s99, %s100
      %p104 = pneg %p98
      %p105 = scmp.eq.s32.totalorder %s25, 1
      %p106 = por %p104, %p105
      %p107 = scmp.ne.s32.totalorder %s99, %s102
      %p108 = scmp.eq.s32.totalorder %s25, 0
      %p109 = por %p107, %p108
      %p110 = scmp.ne.s32.totalorder %s99, %s102
      %p111 = scmp.eq.s32.totalorder %s30, 1
      %p112 = por %p110, %p111
      %p113 = scmp.ne.s32.totalorder %s102, %s103
      %p114 = scmp.eq.s32.totalorder %s30, 0
      %p115 = por %p113, %p114
      %p116 = scmp.ne.s32.totalorder %s102, %s103
      %p117 = scmp.eq.s32.totalorder %s31, 1
      %p118 = por %p116, %p117
      %p120 = scmp.ne.s32.totalorder %s103, %s119
      %p121 = scmp.eq.s32.totalorder %s31, 0
      %p122 = por %p120, %p121
      %s123 = ssub.s32 %s32, %s44
      %p124 = scmp.eq.s32.totalorder %s123, 0
      %s126 = sadd.s32 %s125, 1
      %s127 = scalar_select %p124, %s125, %s126
      %p130 = pneg %p124
      %p131 = scmp.eq.s32.totalorder %s25, 1
      %p132 = por %p130, %p131
      %p133 = scmp.ne.s32.totalorder %s125, %s128
      %p134 = scmp.eq.s32.totalorder %s25, 0
      %p135 = por %p133, %p134
      %p136 = scmp.ne.s32.totalorder %s125, %s128
      %p137 = scmp.eq.s32.totalorder %s30, 1
      %p138 = por %p136, %p137
      %p139 = scmp.ne.s32.totalorder %s128, %s129
      %p140 = scmp.eq.s32.totalorder %s30, 0
      %p141 = por %p139, %p140
      %p142 = scmp.ne.s32.totalorder %s128, %s129
      %p143 = scmp.eq.s32.totalorder %s31, 1
      %p144 = por %p142, %p143
      %p146 = scmp.ne.s32.totalorder %s129, %s145
      %p147 = scmp.eq.s32.totalorder %s31, 0
      %p148 = por %p146, %p147
      %s149 = ssub.s32 %s32, %s44
      %p150 = scmp.eq.s32.totalorder %s149, 0
      %s152 = sadd.s32 %s151, 1
      %s153 = scalar_select %p150, %s151, %s152
      %p156 = pneg %p150
      %p157 = scmp.eq.s32.totalorder %s25, 1
      %p158 = por %p156, %p157
      %p159 = scmp.ne.s32.totalorder %s151, %s154
      %p160 = scmp.eq.s32.totalorder %s25, 0
      %p161 = por %p159, %p160
      %p162 = scmp.ne.s32.totalorder %s151, %s154
      %p163 = scmp.eq.s32.totalorder %s30, 1
      %p164 = por %p162, %p163
      %p165 = scmp.ne.s32.totalorder %s154, %s155
      %p166 = scmp.eq.s32.totalorder %s30, 0
      %p167 = por %p165, %p166
      %p168 = scmp.ne.s32.totalorder %s154, %s155
      %p169 = scmp.eq.s32.totalorder %s31, 1
      %p170 = por %p168, %p169
      %p172 = scmp.ne.s32.totalorder %s155, %s171
      %p173 = scmp.eq.s32.totalorder %s31, 0
      %p174 = por %p172, %p173
      %s175 = ssub.s32 %s32, %s44
      %p176 = scmp.eq.s32.totalorder %s175, 0
      %s178 = sadd.s32 %s177, 1
      %s179 = scalar_select %p176, %s177, %s178
      %p182 = pneg %p176
      %p183 = scmp.eq.s32.totalorder %s25, 1
      %p184 = por %p182, %p183
      %p185 = scmp.ne.s32.totalorder %s177, %s180
      %p186 = scmp.eq.s32.totalorder %s25, 0
      %p187 = por %p185, %p186
      %p188 = scmp.ne.s32.totalorder %s177, %s180
      %p189 = scmp.eq.s32.totalorder %s30, 1
      %p190 = por %p188, %p189
      %p191 = scmp.ne.s32.totalorder %s180, %s181
      %p192 = scmp.eq.s32.totalorder %s30, 0
      %p193 = por %p191, %p192
      %p194 = scmp.ne.s32.totalorder %s180, %s181
      %p195 = scmp.eq.s32.totalorder %s31, 1
      %p196 = por %p194, %p195
      %p198 = scmp.ne.s32.totalorder %s181, %s197
      %p199 = scmp.eq.s32.totalorder %s31, 0
      %p200 = por %p198, %p199
      %s201 = ssub.s32 %s32, %s44
      %p202 = scmp.eq.s32.totalorder %s201, 0
      %s204 = sadd.s32 %s203, 1
      %s205 = scalar_select %p202, %s203, %s204
      %p208 = pneg %p202
      %p209 = scmp.eq.s32.totalorder %s25, 1
      %p210 = por %p208, %p209
      %p211 = scmp.ne.s32.totalorder %s203, %s206
      %p212 = scmp.eq.s32.totalorder %s25, 0
      %p213 = por %p211, %p212
      %p214 = scmp.ne.s32.totalorder %s203, %s206
      %p215 = scmp.eq.s32.totalorder %s30, 1
      %p216 = por %p214, %p215
      %p217 = scmp.ne.s32.totalorder %s206, %s207
      %p218 = scmp.eq.s32.totalorder %s30, 0
      %p219 = por %p217, %p218
      %p220 = scmp.ne.s32.totalorder %s206, %s207
      %p221 = scmp.eq.s32.totalorder %s31, 1
      %p222 = por %p220, %p221
      %p224 = scmp.ne.s32.totalorder %s207, %s223
      %p225 = scmp.eq.s32.totalorder %s31, 0
      %p226 = por %p224, %p225
      %s228 = sadd.s32 %s227, 1
      %p231 = scmp.eq.s32.totalorder %s25, 1
      %p232 = scmp.ne.s32.totalorder %s227, %s229
      %p233 = scmp.eq.s32.totalorder %s25, 0
      %p234 = por %p232, %p233
      %p235 = scmp.ne.s32.totalorder %s227, %s229
      %p236 = scmp.eq.s32.totalorder %s30, 1
      %p237 = por %p235, %p236
      %p238 = scmp.ne.s32.totalorder %s229, %s230
      %p239 = scmp.eq.s32.totalorder %s30, 0
      %p240 = por %p238, %p239
      %p241 = scmp.ne.s32.totalorder %s229, %s230
      %p242 = scmp.eq.s32.totalorder %s31, 1
      %p243 = por %p241, %p242
      %p245 = scmp.ne.s32.totalorder %s230, %s244
      %p246 = scmp.eq.s32.totalorder %s31, 0
      %p247 = por %p245, %p246
      %s248 = ssub.s32 %s33, %s40
      %p249 = scmp.eq.s32.totalorder %s248, 0
      %s251 = sadd.s32 %s250, 1
      %s252 = scalar_select %p249, %s250, %s251
      %p255 = pneg %p249
      %p256 = scmp.eq.s32.totalorder %s25, 1
      %p257 = por %p255, %p256
      %p258 = scmp.ne.s32.totalorder %s250, %s253
      %p259 = scmp.eq.s32.totalorder %s25, 0
      %p260 = por %p258, %p259
      %p261 = scmp.ne.s32.totalorder %s250, %s253
      %p262 = scmp.eq.s32.totalorder %s30, 1
      %p263 = por %p261, %p262
      %p264 = scmp.ne.s32.totalorder %s253, %s254
      %p265 = scmp.eq.s32.totalorder %s30, 0
      %p266 = por %p264, %p265
      %p267 = scmp.ne.s32.totalorder %s253, %s254
      %p268 = scmp.eq.s32.totalorder %s31, 1
      %p269 = por %p267, %p268
      %p271 = scmp.ne.s32.totalorder %s254, %s270
      %p272 = scmp.eq.s32.totalorder %s31, 0
      %p273 = por %p271, %p272
      %s274 = ssub.s32 %s33, %s40
      %p275 = scmp.eq.s32.totalorder %s274, 0
      %s277 = sadd.s32 %s276, 1
      %s278 = scalar_select %p275, %s276, %s277
      %p281 = pneg %p275
      %p282 = scmp.eq.s32.totalorder %s25, 1
      %p283 = por %p281, %p282
      %p284 = scmp.ne.s32.totalorder %s276, %s279
      %p285 = scmp.eq.s32.totalorder %s25, 0
      %p286 = por %p284, %p285
      %p287 = scmp.ne.s32.totalorder %s276, %s279
      %p288 = scmp.eq.s32.totalorder %s30, 1
      %p289 = por %p287, %p288
      %p290 = scmp.ne.s32.totalorder %s279, %s280
      %p291 = scmp.eq.s32.totalorder %s30, 0
      %p292 = por %p290, %p291
      %p293 = scmp.ne.s32.totalorder %s279, %s280
      %p294 = scmp.eq.s32.totalorder %s31, 1
      %p295 = por %p293, %p294
      %p297 = scmp.ne.s32.totalorder %s280, %s296
      %p298 = scmp.eq.s32.totalorder %s31, 0
      %p299 = por %p297, %p298
      %s300 = ssub.s32 %s33, %s40
      %p301 = scmp.eq.s32.totalorder %s300, 0
      %s303 = sadd.s32 %s302, 1
      %s304 = scalar_select %p301, %s302, %s303
      %p307 = pneg %p301
      %p308 = scmp.eq.s32.totalorder %s25, 1
      %p309 = por %p307, %p308
      %p310 = scmp.ne.s32.totalorder %s302, %s305
      %p311 = scmp.eq.s32.totalorder %s25, 0
      %p312 = por %p310, %p311
      %p313 = scmp.ne.s32.totalorder %s302, %s305
      %p314 = scmp.eq.s32.totalorder %s30, 1
      %p315 = por %p313, %p314
      %p316 = scmp.ne.s32.totalorder %s305, %s306
      %p317 = scmp.eq.s32.totalorder %s30, 0
      %p318 = por %p316, %p317
      %p319 = scmp.ne.s32.totalorder %s305, %s306
      %p320 = scmp.eq.s32.totalorder %s31, 1
      %p321 = por %p319, %p320
      %p323 = scmp.ne.s32.totalorder %s306, %s322
      %p324 = scmp.eq.s32.totalorder %s31, 0
      %p325 = por %p323, %p324
      %s326 = ssub.s32 %s33, %s40
      %p327 = scmp.eq.s32.totalorder %s326, 0
      %s329 = sadd.s32 %s328, 1
      %s330 = scalar_select %p327, %s328, %s329
      %p333 = pneg %p327
      %p334 = scmp.eq.s32.totalorder %s25, 1
      %p335 = por %p333, %p334
      %p336 = scmp.ne.s32.totalorder %s328, %s331
      %p337 = scmp.eq.s32.totalorder %s25, 0
      %p338 = por %p336, %p337
      %p339 = scmp.ne.s32.totalorder %s328, %s331
      %p340 = scmp.eq.s32.totalorder %s30, 1
      %p341 = por %p339, %p340
      %p342 = scmp.ne.s32.totalorder %s331, %s332
      %p343 = scmp.eq.s32.totalorder %s30, 0
      %p344 = por %p342, %p343
      %p345 = scmp.ne.s32.totalorder %s331, %s332
      %p346 = scmp.eq.s32.totalorder %s31, 1
      %p347 = por %p345, %p346
      %p349 = scmp.ne.s32.totalorder %s332, %s348
      %p350 = scmp.eq.s32.totalorder %s31, 0
      %p351 = por %p349, %p350
      %s352 = ssub.s32 %s33, %s40
      %p353 = scmp.eq.s32.totalorder %s352, 0
      %s355 = sadd.s32 %s354, 1
      %s356 = scalar_select %p353, %s354, %s355
      %p359 = pneg %p353
      %p360 = scmp.eq.s32.totalorder %s25, 1
      %p361 = por %p359, %p360
      %p362 = scmp.ne.s32.totalorder %s354, %s357
      %p363 = scmp.eq.s32.totalorder %s25, 0
      %p364 = por %p362, %p363
      %p365 = scmp.ne.s32.totalorder %s354, %s357
      %p366 = scmp.eq.s32.totalorder %s30, 1
      %p367 = por %p365, %p366
      %p368 = scmp.ne.s32.totalorder %s357, %s358
      %p369 = scmp.eq.s32.totalorder %s30, 0
      %p370 = por %p368, %p369
      %p371 = scmp.ne.s32.totalorder %s357, %s358
      %p372 = scmp.eq.s32.totalorder %s31, 1
      %p373 = por %p371, %p372
      %p375 = scmp.ne.s32.totalorder %s358, %s374
      %p376 = scmp.eq.s32.totalorder %s31, 0
      %p377 = por %p375, %p376
      %s378 = ssub.s32 %s33, %s40
      %p379 = scmp.eq.s32.totalorder %s378, 0
      %s381 = sadd.s32 %s380, 1
      %s382 = scalar_select %p379, %s380, %s381
      %p385 = pneg %p379
      %p386 = scmp.eq.s32.totalorder %s25, 1
      %p387 = por %p385, %p386
      %p388 = scmp.ne.s32.totalorder %s380, %s383
      %p389 = scmp.eq.s32.totalorder %s25, 0
      %p390 = por %p388, %p389
      %p391 = scmp.ne.s32.totalorder %s380, %s383
      %p392 = scmp.eq.s32.totalorder %s30, 1
      %p393 = por %p391, %p392
      %p394 = scmp.ne.s32.totalorder %s383, %s384
      %p395 = scmp.eq.s32.totalorder %s30, 0
      %p396 = por %p394, %p395
      %p397 = scmp.ne.s32.totalorder %s383, %s384
      %p398 = scmp.eq.s32.totalorder %s31, 1
      %p399 = por %p397, %p398
      %p401 = scmp.ne.s32.totalorder %s384, %s400
      %p402 = scmp.eq.s32.totalorder %s31, 0
      %p403 = por %p401, %p402
      %s405 = sadd.s32 %s404, 1
      %p408 = scmp.eq.s32.totalorder %s25, 1
      %p409 = scmp.ne.s32.totalorder %s404, %s406
      %p410 = scmp.eq.s32.totalorder %s25, 0
      %p411 = por %p409, %p410
      %p412 = scmp.ne.s32.totalorder %s404, %s406
      %p413 = scmp.eq.s32.totalorder %s30, 1
      %p414 = por %p412, %p413
      %p415 = scmp.ne.s32.totalorder %s406, %s407
      %p416 = scmp.eq.s32.totalorder %s30, 0
      %p417 = por %p415, %p416
      %p418 = scmp.ne.s32.totalorder %s406, %s407
      %p419 = scmp.eq.s32.totalorder %s31, 1
      %p420 = por %p418, %p419
      %p422 = scmp.ne.s32.totalorder %s407, %s421
      %p423 = scmp.eq.s32.totalorder %s31, 0
      %p424 = por %p422, %p423
      %s425 = ssub.s32 %s32, %s44
      %p426 = scmp.eq.s32.totalorder %s425, 0
      %s428 = sadd.s32 %s427, 1
      %s429 = scalar_select %p426, %s427, %s428
      %p432 = pneg %p426
      %p433 = scmp.eq.s32.totalorder %s25, 1
      %p434 = por %p432, %p433
      %p435 = scmp.ne.s32.totalorder %s427, %s430
      %p436 = scmp.eq.s32.totalorder %s25, 0
      %p437 = por %p435, %p436
      %p438 = scmp.ne.s32.totalorder %s427, %s430
      %p439 = scmp.eq.s32.totalorder %s30, 1
      %p440 = por %p438, %p439
      %p441 = scmp.ne.s32.totalorder %s430, %s431
      %p442 = scmp.eq.s32.totalorder %s30, 0
      %p443 = por %p441, %p442
      %p444 = scmp.ne.s32.totalorder %s430, %s431
      %p445 = scmp.eq.s32.totalorder %s31, 1
      %p446 = por %p444, %p445
      %p448 = scmp.ne.s32.totalorder %s431, %s447
      %p449 = scmp.eq.s32.totalorder %s31, 0
      %p450 = por %p448, %p449
      %s451 = ssub.s32 %s32, %s44
      %p452 = scmp.eq.s32.totalorder %s451, 0
      %s454 = sadd.s32 %s453, 1
      %s455 = scalar_select %p452, %s453, %s454
      %p458 = pneg %p452
      %p459 = scmp.eq.s32.totalorder %s25, 1
      %p460 = por %p458, %p459
      %p461 = scmp.ne.s32.totalorder %s453, %s456
      %p462 = scmp.eq.s32.totalorder %s25, 0
      %p463 = por %p461, %p462
      %p464 = scmp.ne.s32.totalorder %s453, %s456
      %p465 = scmp.eq.s32.totalorder %s30, 1
      %p466 = por %p464, %p465
      %p467 = scmp.ne.s32.totalorder %s456, %s457
      %p468 = scmp.eq.s32.totalorder %s30, 0
      %p469 = por %p467, %p468
      %p470 = scmp.ne.s32.totalorder %s456, %s457
      %p471 = scmp.eq.s32.totalorder %s31, 1
      %p472 = por %p470, %p471
      %p474 = scmp.ne.s32.totalorder %s457, %s473
      %p475 = scmp.eq.s32.totalorder %s31, 0
      %p476 = por %p474, %p475
      %p477 = scmp.le.s32.totalorder 1, %s25
      %p478 = scmp.lt.s32.totalorder %s25, 3
      %p479 = pnand %p477, %p478
      %p480 = pneg %p479
      // Predicated region
      $region9: #{sasrec_colr_forward.1} parent=5 // pred_check
        _
      $region10: #{sasrec_colr_forward.1} parent=5 // pred_check_branch
        %482 = sbr.rel (%p479) target = $region12
      $region11: #{sasrec_colr_forward.1} parent=5 // pred_region
        %s483 = ssub.s32 %s25, 1
        // Predicated region
        $region13: #{sasrec_colr_forward.1} parent=11 // pred_check
          %p484 = pneg %p63
        $region14: #{sasrec_colr_forward.1} parent=11 // pred_check_branch
          %486 = sbr.rel (%p484) target = $region16
        $region15: #{sasrec_colr_forward.1} parent=11 // pred_region
          %s487 = smul.u32 2, %s34
          %p488 = scmp.lt.s32.totalorder %s487, 1
          %s489 = scalar_select %p488, %s487, 1
          %s490 = smul.addr %s489, 4
          %s491 = scalar_lea.vmem %s0, %s490
          %s492 = smul.u32 2, %s34
        $region16: #{sasrec_colr_forward.1} parent=11 // pred_fallthru
          _
        // Predicated region
        $region17: #{sasrec_colr_forward.1} parent=11 // pred_check
          %p493 = pneg %p89
        $region18: #{sasrec_colr_forward.1} parent=11 // pred_check_branch
          %495 = sbr.rel (%p493) target = $region20
        $region19: #{sasrec_colr_forward.1} parent=11 // pred_region
          %s496 = smul.u32 2, %s34
          %p497 = scmp.lt.s32.totalorder %s496, 1
          %s498 = scalar_select %p497, %s496, 1
          %s499 = smul.addr %s498, 4
          %s500 = scalar_lea.vmem %s1, %s499
          %s501 = smul.u32 2, %s34
        $region20: #{sasrec_colr_forward.1} parent=11 // pred_fallthru
          _
        // Predicated region
        $region21: #{sasrec_colr_forward.1} parent=11 // pred_check
          %p502 = pneg %p115
        $region22: #{sasrec_colr_forward.1} parent=11 // pred_check_branch
          %504 = sbr.rel (%p502) target = $region24
        $region23: #{sasrec_colr_forward.1} parent=11 // pred_region
          %s505 = smul.u32 2, %s34
          %p506 = scmp.lt.s32.totalorder %s505, 1
          %s507 = scalar_select %p506, %s505, 1
          %s508 = smul.addr %s507, 4
          %s509 = scalar_lea.vmem %s2, %s508
          %s510 = smul.u32 2, %s34
        $region24: #{sasrec_colr_forward.1} parent=11 // pred_fallthru
          _
        // Predicated region
        $region25: #{sasrec_colr_forward.1} parent=11 // pred_check
          %p511 = pneg %p141
        $region26: #{sasrec_colr_forward.1} parent=11 // pred_check_branch
          %513 = sbr.rel (%p511) target = $region28
        $region27: #{sasrec_colr_forward.1} parent=11 // pred_region
          %s514 = smul.u32 2, %s34
          %p515 = scmp.lt.s32.totalorder %s514, 1
          %s516 = scalar_select %p515, %s514, 1
          %s517 = smul.addr %s516, 4
          %s518 = scalar_lea.vmem %s3, %s517
          %s519 = smul.u32 2, %s34
        $region28: #{sasrec_colr_forward.1} parent=11 // pred_fallthru
          _
        // Predicated region
        $region29: #{sasrec_colr_forward.1} parent=11 // pred_check
          %p520 = pneg %p167
        $region30: #{sasrec_colr_forward.1} parent=11 // pred_check_branch
          %522 = sbr.rel (%p520) target = $region32
        $region31: #{sasrec_colr_forward.1} parent=11 // pred_region
          %s523 = smul.u32 2, %s34
          %p524 = scmp.lt.s32.totalorder %s523, 1
          %s525 = scalar_select %p524, %s523, 1
          %s526 = smul.addr %s525, 4
          %s527 = scalar_lea.vmem %s4, %s526
          %s528 = smul.u32 2, %s34
        $region32: #{sasrec_colr_forward.1} parent=11 // pred_fallthru
          _
        // Predicated region
        $region33: #{sasrec_colr_forward.1} parent=11 // pred_check
          %p529 = pneg %p193
        $region34: #{sasrec_colr_forward.1} parent=11 // pred_check_branch
          %531 = sbr.rel (%p529) target = $region36
        $region35: #{sasrec_colr_forward.1} parent=11 // pred_region
          %s532 = smul.u32 2, %s34
          %p533 = scmp.lt.s32.totalorder %s532, 1
          %s534 = scalar_select %p533, %s532, 1
          %s535 = smul.addr %s534, 4
          %s536 = scalar_lea.vmem %s5, %s535
          %s537 = smul.u32 2, %s34
        $region36: #{sasrec_colr_forward.1} parent=11 // pred_fallthru
          _
        // Predicated region
        $region37: #{sasrec_colr_forward.1} parent=11 // pred_check
          %p538 = pneg %p219
        $region38: #{sasrec_colr_forward.1} parent=11 // pred_check_branch
          %540 = sbr.rel (%p538) target = $region40
        $region39: #{sasrec_colr_forward.1} parent=11 // pred_region
          %s541 = smul.u32 2, %s34
          %p542 = scmp.lt.s32.totalorder %s541, 1
          %s543 = scalar_select %p542, %s541, 1
          %s544 = smul.addr %s543, 4
          %s545 = scalar_lea.vmem %s6, %s544
          %s546 = smul.u32 2, %s34
        $region40: #{sasrec_colr_forward.1} parent=11 // pred_fallthru
          _
        // Predicated region
        $region41: #{sasrec_colr_forward.1} parent=11 // pred_check
          %p547 = pneg %p240
        $region42: #{sasrec_colr_forward.1} parent=11 // pred_check_branch
          %549 = sbr.rel (%p547) target = $region44
        $region43: #{sasrec_colr_forward.1} parent=11 // pred_region
          _
        $region44: #{sasrec_colr_forward.1} parent=11 // pred_fallthru
          _
        // Predicated region
        $region45: #{sasrec_colr_forward.1} parent=11 // pred_check
          %p550 = pneg %p417
        $region46: #{sasrec_colr_forward.1} parent=11 // pred_check_branch
          %552 = sbr.rel (%p550) target = $region48
        $region47: #{sasrec_colr_forward.1} parent=11 // pred_region
          _
        $region48: #{sasrec_colr_forward.1} parent=11 // pred_fallthru
          _
      $region12: #{sasrec_colr_forward.1} parent=5 // pred_fallthru
        _
      %p553 = scmp.lt.s32.totalorder %s25, 2
      // Predicated region
      $region49: #{sasrec_colr_forward.1} parent=5 // pred_check
        %p554 = pneg %p553
      $region50: #{sasrec_colr_forward.1} parent=5 // pred_check_branch
        %556 = sbr.rel (%p554) target = $region52
      $region51: #{sasrec_colr_forward.1} parent=5 // pred_region
        // Predicated region
        $region53: #{sasrec_colr_forward.1} parent=51 // pred_check
          %p557 = pneg %p260
        $region54: #{sasrec_colr_forward.1} parent=51 // pred_check_branch
          %559 = sbr.rel (%p557) target = $region56
        $region55: #{sasrec_colr_forward.1} parent=51 // pred_region
          %p560 = scmp.lt.s32.totalorder %s33, 1
          %s561 = scalar_select %p560, %s33, 1
          %s562 = smul.addr %s561, 4
          %s563 = smul.addr %s562, 4
          %s564 = scalar_lea.vmem %s8, %s563
        $region56: #{sasrec_colr_forward.1} parent=51 // pred_fallthru
          _
        // Predicated region
        $region57: #{sasrec_colr_forward.1} parent=51 // pred_check
          %p565 = pneg %p286
        $region58: #{sasrec_colr_forward.1} parent=51 // pred_check_branch
          %567 = sbr.rel (%p565) target = $region60
        $region59: #{sasrec_colr_forward.1} parent=51 // pred_region
          %p568 = scmp.lt.s32.totalorder %s33, 1
          %s569 = scalar_select %p568, %s33, 1
          %s570 = smul.addr %s569, 8
          %s571 = smul.addr %s570, 4
          %s572 = scalar_lea.vmem %s9, %s571
        $region60: #{sasrec_colr_forward.1} parent=51 // pred_fallthru
          _
        // Predicated region
        $region61: #{sasrec_colr_forward.1} parent=51 // pred_check
          %p573 = pneg %p312
        $region62: #{sasrec_colr_forward.1} parent=51 // pred_check_branch
          %575 = sbr.rel (%p573) target = $region64
        $region63: #{sasrec_colr_forward.1} parent=51 // pred_region
          %p576 = scmp.lt.s32.totalorder %s33, 1
          %s577 = scalar_select %p576, %s33, 1
          %s578 = smul.addr %s577, 4
          %s579 = smul.addr %s578, 4
          %s580 = scalar_lea.vmem %s10, %s579
        $region64: #{sasrec_colr_forward.1} parent=51 // pred_fallthru
          _
        // Predicated region
        $region65: #{sasrec_colr_forward.1} parent=51 // pred_check
          %p581 = pneg %p338
        $region66: #{sasrec_colr_forward.1} parent=51 // pred_check_branch
          %583 = sbr.rel (%p581) target = $region68
        $region67: #{sasrec_colr_forward.1} parent=51 // pred_region
          %p584 = scmp.lt.s32.totalorder %s33, 1
          %s585 = scalar_select %p584, %s33, 1
          %s586 = smul.addr %s585, 4
          %s587 = smul.addr %s586, 4
          %s588 = scalar_lea.vmem %s11, %s587
        $region68: #{sasrec_colr_forward.1} parent=51 // pred_fallthru
          _
        // Predicated region
        $region69: #{sasrec_colr_forward.1} parent=51 // pred_check
          %p589 = pneg %p364
        $region70: #{sasrec_colr_forward.1} parent=51 // pred_check_branch
          %591 = sbr.rel (%p589) target = $region72
        $region71: #{sasrec_colr_forward.1} parent=51 // pred_region
          %p592 = scmp.lt.s32.totalorder %s33, 1
          %s593 = scalar_select %p592, %s33, 1
          %s594 = smul.addr %s593, 4
          %s595 = smul.addr %s594, 4
          %s596 = scalar_lea.vmem %s12, %s595
        $region72: #{sasrec_colr_forward.1} parent=51 // pred_fallthru
          _
        // Predicated region
        $region73: #{sasrec_colr_forward.1} parent=51 // pred_check
          %p597 = pneg %p390
        $region74: #{sasrec_colr_forward.1} parent=51 // pred_check_branch
          %599 = sbr.rel (%p597) target = $region76
        $region75: #{sasrec_colr_forward.1} parent=51 // pred_region
          %p600 = scmp.lt.s32.totalorder %s33, 1
          %s601 = scalar_select %p600, %s33, 1
          %s602 = smul.addr %s601, 2
          %s603 = smul.addr %s602, 8
          %s604 = scalar_lea.vmem %s13, %s603
        $region76: #{sasrec_colr_forward.1} parent=51 // pred_fallthru
          _
      $region52: #{sasrec_colr_forward.1} parent=5 // pred_fallthru
        _
      %p605 = scmp.le.s32.totalorder 1, %s25
      %p606 = scmp.lt.s32.totalorder %s25, 3
      %p607 = pnand %p605, %p606
      %p608 = pneg %p607
      // Predicated region
      $region77: #{sasrec_colr_forward.1} parent=5 // pred_check
        _
      $region78: #{sasrec_colr_forward.1} parent=5 // pred_check_branch
        %610 = sbr.rel (%p607) target = $region80
      $region79: #{sasrec_colr_forward.1} parent=5 // pred_region
        %s611 = ssub.s32 %s25, 1
        %s612 = smul.u32 2, %s34
        %p613 = scmp.lt.s32.totalorder %s612, 1
        %s614 = scalar_select %p613, %s612, 1
        %s615 = smul.addr %s614, 4
        %s616 = scalar_lea.vmem %s0, %s615
        %p617 = pneg %p63
        %p618 = pneg %p60
        %s619 = smul.u32 2, %s34
        %p620 = scmp.lt.s32.totalorder %s619, 1
        %s621 = scalar_select %p620, %s619, 1
        %s622 = smul.addr %s621, 4
        %s623 = scalar_lea.vmem %s1, %s622
        %p624 = pneg %p89
        %p625 = pneg %p86
        %s626 = smul.u32 2, %s34
        %p627 = scmp.lt.s32.totalorder %s626, 1
        %s628 = scalar_select %p627, %s626, 1
        %s629 = smul.addr %s628, 4
        %s630 = scalar_lea.vmem %s2, %s629
        %p631 = pneg %p115
        %p632 = pneg %p112
        %s633 = smul.u32 2, %s34
        %p634 = scmp.lt.s32.totalorder %s633, 1
        %s635 = scalar_select %p634, %s633, 1
        %s636 = smul.addr %s635, 4
        %s637 = scalar_lea.vmem %s3, %s636
        %p638 = pneg %p141
        %p639 = pneg %p138
        %s640 = smul.u32 2, %s34
        %p641 = scmp.lt.s32.totalorder %s640, 1
        %s642 = scalar_select %p641, %s640, 1
        %s643 = smul.addr %s642, 4
        %s644 = scalar_lea.vmem %s4, %s643
        %p645 = pneg %p167
        %p646 = pneg %p164
        %s647 = smul.u32 2, %s34
        %p648 = scmp.lt.s32.totalorder %s647, 1
        %s649 = scalar_select %p648, %s647, 1
        %s650 = smul.addr %s649, 4
        %s651 = scalar_lea.vmem %s5, %s650
        %p652 = pneg %p193
        %p653 = pneg %p190
        %s654 = smul.u32 2, %s34
        %p655 = scmp.lt.s32.totalorder %s654, 1
        %s656 = scalar_select %p655, %s654, 1
        %s657 = smul.addr %s656, 4
        %s658 = scalar_lea.vmem %s6, %s657
        %p659 = pneg %p219
        %p660 = pneg %p216
        %p661 = pneg %p240
        %p662 = pneg %p237
        %p663 = scmp.lt.s32.totalorder %s35, 1
        %s664 = scalar_select %p663, %s35, 1
        %s665 = smul.addr %s664, 4
        %s666 = smul.addr %s665, 4
        %s667 = scalar_lea.vmem %s8, %s666
        %p668 = pneg %p266
        %p669 = pneg %p263
        %p670 = scmp.lt.s32.totalorder %s35, 1
        %s671 = scalar_select %p670, %s35, 1
        %s672 = smul.addr %s671, 8
        %s673 = smul.addr %s672, 4
        %s674 = scalar_lea.vmem %s9, %s673
        %p675 = pneg %p292
        %p676 = pneg %p289
        %p677 = scmp.lt.s32.totalorder %s35, 1
        %s678 = scalar_select %p677, %s35, 1
        %s679 = smul.addr %s678, 4
        %s680 = smul.addr %s679, 4
        %s681 = scalar_lea.vmem %s10, %s680
        %p682 = pneg %p318
        %p683 = pneg %p315
        %p684 = scmp.lt.s32.totalorder %s35, 1
        %s685 = scalar_select %p684, %s35, 1
        %s686 = smul.addr %s685, 4
        %s687 = smul.addr %s686, 4
        %s688 = scalar_lea.vmem %s11, %s687
        %p689 = pneg %p344
        %p690 = pneg %p341
        %p691 = scmp.lt.s32.totalorder %s35, 1
        %s692 = scalar_select %p691, %s35, 1
        %s693 = smul.addr %s692, 4
        %s694 = smul.addr %s693, 4
        %s695 = scalar_lea.vmem %s12, %s694
        %p696 = pneg %p370
        %p697 = pneg %p367
        %p698 = scmp.lt.s32.totalorder %s35, 1
        %s699 = scalar_select %p698, %s35, 1
        %s700 = smul.addr %s699, 2
        %s701 = smul.addr %s700, 8
        %s702 = scalar_lea.vmem %s13, %s701
        %p703 = pneg %p396
        %p704 = pneg %p393
        %p705 = pneg %p417
        %p706 = pneg %p414
        %p707 = pneg %p443
        %p708 = pneg %p440
        %p709 = pneg %p469
        %p710 = pneg %p466
        %s711 = smul.u32 2, %s34
        %p712 = scmp.lt.s32.totalorder %s711, 1
        %s713 = scalar_select %p712, %s711, 1
        %s714 = smul.addr %s713, 4
        %s715 = scalar_lea.vmem %s0, %s714
        %s716 = smul.u32 2, %s34
        %s717 = smul.u32 2, %s34
        %p718 = scmp.lt.s32.totalorder %s717, 1
        %s719 = scalar_select %p718, %s717, 1
        %s720 = smul.addr %s719, 4
        %s721 = scalar_lea.vmem %s1, %s720
        %s722 = smul.u32 2, %s34
        %s723 = smul.u32 2, %s34
        %p724 = scmp.lt.s32.totalorder %s723, 1
        %s725 = scalar_select %p724, %s723, 1
        %s726 = smul.addr %s725, 4
        %s727 = scalar_lea.vmem %s2, %s726
        %s728 = smul.u32 2, %s34
        %s729 = smul.u32 2, %s34
        %p730 = scmp.lt.s32.totalorder %s729, 1
        %s731 = scalar_select %p730, %s729, 1
        %s732 = smul.addr %s731, 4
        %s733 = scalar_lea.vmem %s3, %s732
        %s734 = smul.u32 2, %s34
        %s735 = smul.u32 2, %s34
        %p736 = scmp.lt.s32.totalorder %s735, 1
        %s737 = scalar_select %p736, %s735, 1
        %s738 = smul.addr %s737, 4
        %s739 = scalar_lea.vmem %s4, %s738
        %s740 = smul.u32 2, %s34
        %s741 = smul.u32 2, %s34
        %p742 = scmp.lt.s32.totalorder %s741, 1
        %s743 = scalar_select %p742, %s741, 1
        %s744 = smul.addr %s743, 4
        %s745 = scalar_lea.vmem %s5, %s744
        %s746 = smul.u32 2, %s34
        %s747 = smul.u32 2, %s34
        %p748 = scmp.lt.s32.totalorder %s747, 1
        %s749 = scalar_select %p748, %s747, 1
        %s750 = smul.addr %s749, 4
        %s751 = scalar_lea.vmem %s6, %s750
        %s752 = smul.u32 2, %s34
        %p753 = scmp.lt.s32.totalorder %s35, 1
        %s754 = scalar_select %p753, %s35, 1
        %s755 = smul.addr %s754, 4
        %s756 = smul.addr %s755, 4
        %s757 = scalar_lea.vmem %s8, %s756
        %p758 = scmp.lt.s32.totalorder %s35, 1
        %s759 = scalar_select %p758, %s35, 1
        %s760 = smul.addr %s759, 8
        %s761 = smul.addr %s760, 4
        %s762 = scalar_lea.vmem %s9, %s761
        %p763 = scmp.lt.s32.totalorder %s35, 1
        %s764 = scalar_select %p763, %s35, 1
        %s765 = smul.addr %s764, 4
        %s766 = smul.addr %s765, 4
        %s767 = scalar_lea.vmem %s10, %s766
        %p768 = scmp.lt.s32.totalorder %s35, 1
        %s769 = scalar_select %p768, %s35, 1
        %s770 = smul.addr %s769, 4
        %s771 = smul.addr %s770, 4
        %s772 = scalar_lea.vmem %s11, %s771
        %p773 = scmp.lt.s32.totalorder %s35, 1
        %s774 = scalar_select %p773, %s35, 1
        %s775 = smul.addr %s774, 4
        %s776 = smul.addr %s775, 4
        %s777 = scalar_lea.vmem %s12, %s776
        %p778 = scmp.lt.s32.totalorder %s35, 1
        %s779 = scalar_select %p778, %s35, 1
        %s780 = smul.addr %s779, 2
        %s781 = smul.addr %s780, 8
        %s782 = scalar_lea.vmem %s13, %s781
        %p784 = scmp.eq.s32.totalorder %s35, 0
        // Predicated region
        $region81: #{sasrec_colr_forward.1} parent=79 // pred_check
          %p785 = pneg %p784
        $region82: #{sasrec_colr_forward.1} parent=79 // pred_check_branch
          %787 = sbr.rel (%p785) target = $region84
        $region83: #{sasrec_colr_forward.1} parent=79 // pred_region
          %v788 = vld [vmem:[%s715] sm:$0xf]
          %v789 = vld [vmem:[%s715 + $0x4] sm:$0xf]
          %v790 = vld [vmem:[%s7] sm:$0x3]
          %v791 = vld [vmem:[%s721] sm:$0xf]
          %v792 = vld [vmem:[%s721 + $0x4] sm:$0xf]
          %v793 = vunpack.c.l.bf16 %v791
          %v794 = vunpack.c.l.bf16 %v792
          %v797 = vunpack.c.l.b16 %v788
          %v798 = vunpack.c.l.b16 %v789
          %v799 = vpack.c.b16 %v798, %v797
          %vm800 = vcmask 31744
          %v802 = vsel %vm800, %v799, 0
          %vm804 = vcmask 1041408
          %v806 = vsel %vm804, %v790, 0
          %808 = vmatprep.subr.bf16.mxu0 0
          %809 = vmatpush1.bf16.msra.mxu0 0
          %810 = vmatprep.subr.bf16.mxu0 0
          %811 = vmatpush1.bf16.msra.mxu0 0
          %812 = vmatprep.subr.bf16.mxu0 0
          %813 = vmatpush1.bf16.msra.mxu0 0
          %814 = vmatprep.subr.bf16.mxu0 0
          %815 = vmatpush1.bf16.msra.mxu0 0
          %816 = vmatprep.subr.bf16.mxu0 0
          %817 = vmatpush1.bf16.msra.mxu0 0
          %818 = vmatprep.subr.bf16.mxu0 0
          %819 = vmatpush1.bf16.msra.mxu0 0
          %820 = vmatprep.subr.bf16.mxu0 0
          %821 = vmatpush1.bf16.msra.mxu0 0
          %822 = vmatprep.subr.bf16.mxu0 0
          %823 = vmatpush1.bf16.msra.mxu0 %v806
          %824 = vmatprep.subr.bf16.mxu0 0
          %825 = vmatpush2.bf16.msra.mxu0 0
          %826 = vmatprep.subr.bf16.mxu0 0
          %827 = vmatpush2.bf16.msra.mxu0 0
          %828 = vmatprep.subr.bf16.mxu0 0
          %829 = vmatpush2.bf16.msra.mxu0 0
          %830 = vmatprep.subr.bf16.mxu0 0
          %831 = vmatpush2.bf16.msra.mxu0 0
          %832 = vmatprep.subr.bf16.mxu0 0
          %833 = vmatpush2.bf16.msra.mxu0 0
          %834 = vmatprep.subr.bf16.mxu0 0
          %835 = vmatpush2.bf16.msra.mxu0 0
          %836 = vmatprep.subr.bf16.mxu0 0
          %837 = vmatpush2.bf16.msra.mxu0 0
          %838 = vmatprep.subr.bf16.mxu0 0
          %839 = vmatpush2.bf16.msra.mxu0 0
          %840 = vmatprep.mubr.bf16.mxu0 0
          %841 = vmatmul.mubr.bf16.gmra.mxu0 %v802
          %v842 = vpop.f32.mrf.mxu0
          %v843 = vadd.f32 %v793, %v842
          %v844 = vpop.f32.mrf.mxu0
          %v845 = vpop.f32.mrf.mxu0
          %v846 = vadd.f32 %v794, %v845
          %v847 = vpop.f32.mrf.mxu0
          %848 = vdwg.mxu0
          %v849 = vmul.f32 %v843, 5.656854
          %v850 = vmul.f32 %v846, 5.656854
          %v851 = vld [vmem:[%s727] sm:$0xf]
          %v852 = vld [vmem:[%s727 + $0x4] sm:$0xf]
          %v853 = vunpack.c.l.bf16 %v851
          %v854 = vunpack.c.l.bf16 %v852
          %v855 = vadd.f32 %v849, %v853
          %v856 = vadd.f32 %v850, %v854
          %vm857 = vcmask 261120
          %858 = vst.msk [vmem:[#allocation2] sm:$0xff] %vm857, %v855
          %859 = vst.msk [vmem:[#allocation2 + $0x8] sm:$0xff] %vm857, %v856
        $region84: #{sasrec_colr_forward.1} parent=79 // pred_fallthru
          _
        %v860 = vld [vmem:[#allocation2] sm:$0xff]
        %v861 = vld [vmem:[#allocation2 + $0x8] sm:$0xff]
        %v862 = vld [vmem:[%s782] sm:$0xff]
        %v863 = vld [vmem:[%s782 + $0x8] sm:$0x3]
        %v864 = vlaneseq
        %v865 = vshrl.u32 %v864, 7
        %v866 = vlaneseq
        %v867 = vand.u32 %v866, 127
        %vm868 = vcmp.le.s32.totalorder %v867, %v865
        %v869 = vsel %vm868, 0.0, -1e+30
        %vm870 = vcmask 261120
        %v871 = vsel %vm870, %v860, 0.0
        %872 = vadd.xlane.f32.xlu0 %v871
        %v873 = vpop.xlane.xlu0 %872
        %v874 = vsel %vm870, %v861, 0.0
        %875 = vadd.xlane.f32.xlu0 %v874
        %v876 = vpop.xlane.xlu0 %875
        %v877 = vrcp.pop 32.0
        %v878 = vmul.f32 %v873, %v877
        %v879 = vmul.f32 %v876, %v877
        %v880 = vsub.f32 %v860, %v878
        %v881 = vsub.f32 %v861, %v879
        %v882 = vmul.f32 %v880, %v880
        %v883 = vmul.f32 %v881, %v881
        %v884 = vsel %vm870, %v882, 0.0
        %885 = vadd.xlane.f32.xlu0 %v884
        %v886 = vpop.xlane.xlu0 %885
        %v887 = vsel %vm870, %v883, 0.0
        %888 = vadd.xlane.f32.xlu0 %v887
        %v889 = vpop.xlane.xlu0 %888
        %v890 = vmul.f32 %v886, %v877
        %v891 = vmul.f32 %v889, %v877
        %v892 = vadd.f32 %v890, 1e-08
        %v893 = vadd.f32 %v891, 1e-08
        %v894 = vrsqrt.pop %v892
        %v895 = vrsqrt.pop %v893
        %v896 = vmul.f32 %v880, %v894
        %v897 = vmul.f32 %v881, %v895
        %v898 = vlaneseq
        %v899 = vshrl.u32 %v898, 7
        %v900 = vsub.s32 0, %v899
        %v901 = vrot.slane %v862, %v900
        %v902 = vmul.f32 %v896, %v901
        %v903 = vmul.f32 %v897, %v901
        %v904 = vlaneseq
        %v905 = vshrl.u32 %v904, 7
        %v906 = vsub.s32 1, %v905
        %v907 = vrot.slane %v862, %v906
        %v908 = vadd.f32 %v902, %v907
        %v909 = vadd.f32 %v903, %v907
        %v910 = vpack.c.bf16 %v909, %v908
        %v911 = vpack.c.bf16 %v861, %v860
        %v912 = vld [vmem:[%s757] sm:$0xf]
        %v913 = vld [vmem:[%s757 + $0x4] sm:$0xf]
        %v914 = vld [vmem:[%s757 + $0x8] sm:$0xf]
        %v915 = vld [vmem:[%s757 + $0xc] sm:$0xf]
        %v916 = vlaneseq
        %v917 = vshrl.u32 %v916, 7
        %v918 = vsub.s32 2, %v917
        %v919 = vrot.slane %v862, %v918
        %v924 = vunpack.c.l.b16 %v912
        %v925 = vunpack.c.l.b16 %v913
        %v926 = vunpack.c.l.b16 %v914
        %v927 = vunpack.c.l.b16 %v915
        %v928 = vpack.c.b16 %v925, %v924
        %v929 = vpack.c.b16 %v927, %v926
        %v931 = vsel %vm870, %v910, 0
        %v934 = vsel %vm870, %v928, 0
        %v937 = vsel %vm870, %v929, 0
        %939 = vmatprep.subr.bf16.mxu0 0
        %940 = vmatpush1.bf16.xpose.msra.mxu0 0
        %941 = vmatprep.subr.bf16.mxu0 0
        %942 = vmatpush1.bf16.xpose.msra.mxu0 0
        %943 = vmatprep.subr.bf16.mxu0 0
        %944 = vmatpush1.bf16.xpose.msra.mxu0 0
        %945 = vmatprep.subr.bf16.mxu0 0
        %946 = vmatpush1.bf16.xpose.msra.mxu0 0
        %947 = vmatprep.subr.bf16.mxu0 0
        %948 = vmatpush1.bf16.xpose.msra.mxu0 0
        %949 = vmatprep.subr.bf16.mxu0 0
        %950 = vmatpush1.bf16.xpose.msra.mxu0 0
        %951 = vmatprep.subr.bf16.mxu0 0
        %952 = vmatpush1.bf16.xpose.msra.mxu0 %v937
        %953 = vmatprep.subr.bf16.mxu0 0
        %954 = vmatpush1.bf16.xpose.msra.mxu0 %v934
        %955 = vmatprep.subr.bf16.mxu0 0
        %956 = vmatpush2.bf16.xpose.msra.mxu0 0
        %957 = vmatprep.subr.bf16.mxu0 0
        %958 = vmatpush2.bf16.xpose.msra.mxu0 0
        %959 = vmatprep.subr.bf16.mxu0 0
        %960 = vmatpush2.bf16.xpose.msra.mxu0 0
        %961 = vmatprep.subr.bf16.mxu0 0
        %962 = vmatpush2.bf16.xpose.msra.mxu0 0
        %963 = vmatprep.subr.bf16.mxu0 0
        %964 = vmatpush2.bf16.xpose.msra.mxu0 0
        %965 = vmatprep.subr.bf16.mxu0 0
        %966 = vmatpush2.bf16.xpose.msra.mxu0 0
        %967 = vmatprep.subr.bf16.mxu0 0
        %968 = vmatpush2.bf16.xpose.msra.mxu0 0
        %969 = vmatprep.subr.bf16.mxu0 0
        %970 = vmatpush2.bf16.xpose.msra.mxu0 0
        %971 = vmatprep.mubr.bf16.mxu0 0
        %972 = vmatmul.mubr.bf16.gmra.mxu0 %v931
        %v973 = vpop.f32.mrf.mxu0
        %v974 = vadd.f32 %v919, %v973
        %v975 = vpop.f32.mrf.mxu0
        %v976 = vpop.f32.mrf.mxu0
        %v977 = vadd.f32 %v919, %v976
        %v978 = vpop.f32.mrf.mxu0
        %979 = vdwg.mxu0
        %v980 = vld [vmem:[%s762] sm:$0xf]
        %v981 = vld [vmem:[%s762 + $0x4] sm:$0xf]
        %v982 = vld [vmem:[%s762 + $0x8] sm:$0xf]
        %v983 = vld [vmem:[%s762 + $0xc] sm:$0xf]
        %v984 = vld [vmem:[%s762 + $0x10] sm:$0xf]
        %v985 = vld [vmem:[%s762 + $0x14] sm:$0xf]
        %v986 = vld [vmem:[%s762 + $0x18] sm:$0xf]
        %v987 = vld [vmem:[%s762 + $0x1c] sm:$0xf]
        %v996 = vunpack.c.l.b16 %v980
        %v997 = vunpack.c.l.b16 %v981
        %v998 = vunpack.c.l.b16 %v982
        %v999 = vunpack.c.l.b16 %v983
        %v1000 = vunpack.c.l.b16 %v984
        %v1001 = vunpack.c.l.b16 %v985
        %v1002 = vunpack.c.l.b16 %v986
        %v1003 = vunpack.c.l.b16 %v987
        %v1004 = vpack.c.b16 %v997, %v996
        %v1005 = vpack.c.b16 %v999, %v998
        %v1006 = vpack.c.b16 %v1001, %v1000
        %v1007 = vpack.c.b16 %v1003, %v1002
        %v1009 = vsel %vm870, %v911, 0
        %v1012 = vsel %vm870, %v1004, 0
        %v1015 = vsel %vm870, %v1005, 0
        %v1018 = vsel %vm870, %v1006, 0
        %v1021 = vsel %vm870, %v1007, 0
        %1023 = vmatprep.subr.bf16.mxu0 0
        %1024 = vmatpush1.bf16.xpose.msra.mxu0 0
        %1025 = vmatprep.subr.bf16.mxu0 0
        %1026 = vmatpush1.bf16.xpose.msra.mxu0 0
        %1027 = vmatprep.subr.bf16.mxu0 0
        %1028 = vmatpush1.bf16.xpose.msra.mxu0 0
        %1029 = vmatprep.subr.bf16.mxu0 0
        %1030 = vmatpush1.bf16.xpose.msra.mxu0 0
        %1031 = vmatprep.subr.bf16.mxu0 0
        %1032 = vmatpush1.bf16.xpose.msra.mxu0 %v1021
        %1033 = vmatprep.subr.bf16.mxu0 0
        %1034 = vmatpush1.bf16.xpose.msra.mxu0 %v1018
        %1035 = vmatprep.subr.bf16.mxu0 0
        %1036 = vmatpush1.bf16.xpose.msra.mxu0 %v1015
        %1037 = vmatprep.subr.bf16.mxu0 0
        %1038 = vmatpush1.bf16.xpose.msra.mxu0 %v1012
        %1039 = vmatprep.subr.bf16.mxu0 0
        %1040 = vmatpush2.bf16.xpose.msra.mxu0 0
        %1041 = vmatprep.subr.bf16.mxu0 0
        %1042 = vmatpush2.bf16.xpose.msra.mxu0 0
        %1043 = vmatprep.subr.bf16.mxu0 0
        %1044 = vmatpush2.bf16.xpose.msra.mxu0 0
        %1045 = vmatprep.subr.bf16.mxu0 0
        %1046 = vmatpush2.bf16.xpose.msra.mxu0 0
        %1047 = vmatprep.subr.bf16.mxu0 0
        %1048 = vmatpush2.bf16.xpose.msra.mxu0 0
        %1049 = vmatprep.subr.bf16.mxu0 0
        %1050 = vmatpush2.bf16.xpose.msra.mxu0 0
        %1051 = vmatprep.subr.bf16.mxu0 0
        %1052 = vmatpush2.bf16.xpose.msra.mxu0 0
        %1053 = vmatprep.subr.bf16.mxu0 0
        %1054 = vmatpush2.bf16.xpose.msra.mxu0 0
        %1055 = vmatprep.mubr.bf16.mxu0 0
        %1056 = vmatmul.mubr.bf16.gmra.mxu0 %v1009
        %v1057 = vpop.f32.mrf.mxu0
        %v1058 = vadd.f32 0.0, %v1057
        %v1059 = vpop.f32.mrf.mxu0
        %v1060 = vpop.f32.mrf.mxu0
        %v1061 = vadd.f32 0.0, %v1060
        %v1062 = vpop.f32.mrf.mxu0
        %1063 = vdwg.mxu0
        %v1064 = vlaneseq
        %v1065 = vshrl.u32 %v1064, 7
        %v1066 = vsub.s32 3, %v1065
        %v1067 = vrot.slane %v862, %v1066
        %v1068 = vadd.f32 %v1058, %v1067
        %v1069 = vadd.f32 %v1061, %v1067
        %v1070 = vlaneseq
        %v1071 = vshrl.u32 %v1070, 7
        %v1072 = vsub.s32 4, %v1071
        %v1073 = vrot.slane %v862, %v1072
        %1075 = vrot.lane.b32.xlu0 %v1073, 32
        %v1076 = vpop.permute.xlu0 %1075
        %v1078 = vadd.f32 %v1058, %v1076
        %v1079 = vadd.f32 %v1061, %v1076
        %v1080 = vpack.c.bf16 %v974, %v974
        %v1081 = vpack.c.bf16 %v977, %v977
        %v1082 = vpack.c.bf16 %v1068, %v1068
        %v1083 = vpack.c.bf16 %v1069, %v1069
        %v1084 = vpack.c.bf16 %v1078, %v1078
        %v1085 = vpack.c.bf16 %v1079, %v1079
        %vm1086 = vcmask 130048
        %v1088 = vsel %vm1086, %v1080, 0
        %v1091 = vsel %vm1086, %v1082, 0
        %1093 = vmatprep.subr.bf16.mxu0 0
        %1094 = vmatpush1.bf16.xpose.msra.mxu0 0
        %1095 = vmatprep.subr.bf16.mxu0 0
        %1096 = vmatpush1.bf16.xpose.msra.mxu0 0
        %1097 = vmatprep.subr.bf16.mxu0 0
        %1098 = vmatpush1.bf16.xpose.msra.mxu0 0
        %1099 = vmatprep.subr.bf16.mxu0 0
        %1100 = vmatpush1.bf16.xpose.msra.mxu0 0
        %1101 = vmatprep.subr.bf16.mxu0 0
        %1102 = vmatpush1.bf16.xpose.msra.mxu0 0
        %1103 = vmatprep.subr.bf16.mxu0 0
        %1104 = vmatpush1.bf16.xpose.msra.mxu0 0
        %1105 = vmatprep.subr.bf16.mxu0 0
        %1106 = vmatpush1.bf16.xpose.msra.mxu0 0
        %1107 = vmatprep.subr.bf16.mxu0 0
        %1108 = vmatpush1.bf16.xpose.msra.mxu0 %v1091
        %1109 = vmatprep.subr.bf16.mxu0 0
        %1110 = vmatpush2.bf16.xpose.msra.mxu0 0
        %1111 = vmatprep.subr.bf16.mxu0 0
        %1112 = vmatpush2.bf16.xpose.msra.mxu0 0
        %1113 = vmatprep.subr.bf16.mxu0 0
        %1114 = vmatpush2.bf16.xpose.msra.mxu0 0
        %1115 = vmatprep.subr.bf16.mxu0 0
        %1116 = vmatpush2.bf16.xpose.msra.mxu0 0
        %1117 = vmatprep.subr.bf16.mxu0 0
        %1118 = vmatpush2.bf16.xpose.msra.mxu0 0
        %1119 = vmatprep.subr.bf16.mxu0 0
        %1120 = vmatpush2.bf16.xpose.msra.mxu0 0
        %1121 = vmatprep.subr.bf16.mxu0 0
        %1122 = vmatpush2.bf16.xpose.msra.mxu0 0
        %1123 = vmatprep.subr.bf16.mxu0 0
        %1124 = vmatpush2.bf16.xpose.msra.mxu0 0
        %1125 = vmatprep.mubr.bf16.mxu0 0
        %1126 = vmatmul.mubr.bf16.gmra.mxu0 %v1088
        %v1127 = vpop.f32.mrf.mxu0
        %v1128 = vadd.f32 0.0, %v1127
        %v1129 = vpop.f32.mrf.mxu0
        %v1130 = vpop.f32.mrf.mxu0
        %v1131 = vpop.f32.mrf.mxu0
        %1132 = vdwg.mxu0
        %v1134 = vsel %vm1086, %v1081, 0
        %v1137 = vsel %vm1086, %v1083, 0
        %1139 = vmatprep.subr.bf16.mxu0 0
        %1140 = vmatpush1.bf16.xpose.msra.mxu0 0
        %1141 = vmatprep.subr.bf16.mxu0 0
        %1142 = vmatpush1.bf16.xpose.msra.mxu0 0
        %1143 = vmatprep.subr.bf16.mxu0 0
        %1144 = vmatpush1.bf16.xpose.msra.mxu0 0
        %1145 = vmatprep.subr.bf16.mxu0 0
        %1146 = vmatpush1.bf16.xpose.msra.mxu0 0
        %1147 = vmatprep.subr.bf16.mxu0 0
        %1148 = vmatpush1.bf16.xpose.msra.mxu0 0
        %1149 = vmatprep.subr.bf16.mxu0 0
        %1150 = vmatpush1.bf16.xpose.msra.mxu0 0
        %1151 = vmatprep.subr.bf16.mxu0 0
        %1152 = vmatpush1.bf16.xpose.msra.mxu0 0
        %1153 = vmatprep.subr.bf16.mxu0 0
        %1154 = vmatpush1.bf16.xpose.msra.mxu0 %v1137
        %1155 = vmatprep.subr.bf16.mxu0 0
        %1156 = vmatpush2.bf16.xpose.msra.mxu0 0
        %1157 = vmatprep.subr.bf16.mxu0 0
        %1158 = vmatpush2.bf16.xpose.msra.mxu0 0
        %1159 = vmatprep.subr.bf16.mxu0 0
        %1160 = vmatpush2.bf16.xpose.msra.mxu0 0
        %1161 = vmatprep.subr.bf16.mxu0 0
        %1162 = vmatpush2.bf16.xpose.msra.mxu0 0
        %1163 = vmatprep.subr.bf16.mxu0 0
        %1164 = vmatpush2.bf16.xpose.msra.mxu0 0
        %1165 = vmatprep.subr.bf16.mxu0 0
        %1166 = vmatpush2.bf16.xpose.msra.mxu0 0
        %1167 = vmatprep.subr.bf16.mxu0 0
        %1168 = vmatpush2.bf16.xpose.msra.mxu0 0
        %1169 = vmatprep.subr.bf16.mxu0 0
        %1170 = vmatpush2.bf16.xpose.msra.mxu0 0
        %1171 = vmatprep.mubr.bf16.mxu0 0
        %1172 = vmatmul.mubr.bf16.gmra.mxu0 %v1134
        %v1173 = vpop.f32.mrf.mxu0
        %v1174 = vadd.f32 0.0, %v1173
        %v1175 = vpop.f32.mrf.mxu0
        %v1176 = vpop.f32.mrf.mxu0
        %v1177 = vpop.f32.mrf.mxu0
        %1178 = vdwg.mxu0
        %v1179 = vmul.f32 %v1128, 0.25
        %v1180 = vmul.f32 %v1174, 0.25
        %v1181 = vadd.f32 %v1179, %v869
        %v1182 = vadd.f32 %v1180, %v869
        %vm1183 = vcmask 64512
        %v1184 = vsel %vm1183, %v1181, -inf
        %1185 = vmax.xlane.f32.xlu0 %v1184
        %v1186 = vpop.xlane.xlu0 %1185
        %v1187 = vsel %vm1183, %v1182, -inf
        %1188 = vmax.xlane.f32.xlu0 %v1187
        %v1189 = vpop.xlane.xlu0 %1188
        %v1190 = vsub.f32 %v1181, %v1186
        %v1191 = vsub.f32 %v1182, %v1189
        %v1192 = vmul.f32 %v1190, 1.442695
        %v1193 = vpow.pop %v1192
        %v1194 = vmul.f32 %v1191, 1.442695
        %v1195 = vpow.pop %v1194
        %v1196 = vsel %vm1183, %v1193, 0.0
        %1197 = vadd.xlane.f32.xlu0 %v1196
        %v1198 = vpop.xlane.xlu0 %1197
        %v1199 = vsel %vm1183, %v1195, 0.0
        %1200 = vadd.xlane.f32.xlu0 %v1199
        %v1201 = vpop.xlane.xlu0 %1200
        %v1202 = vrcp.pop %v1198
        %v1203 = vrcp.pop %v1201
        %v1204 = vmul.f32 %v1193, %v1202
        %v1205 = vmul.f32 %v1195, %v1203
        %v1206 = vpack.c.bf16 %v1204, %v1204
        %v1207 = vpack.c.bf16 %v1205, %v1205
        %1209 = vrot.lane.b32.xlu0 %v1084, 96
        %v1210 = vpop.permute.xlu0 %1209
        %v1212 = vsel %vm1183, %v1206, 0
        %vm1214 = vcmask 1043456
        %v1216 = vsel %vm1214, %v1210, 0
        %1218 = vmatprep.subr.bf16.mxu0 0
        %1219 = vmatpush1.bf16.msra.mxu0 0
        %1220 = vmatprep.subr.bf16.mxu0 0
        %1221 = vmatpush1.bf16.msra.mxu0 0
        %1222 = vmatprep.subr.bf16.mxu0 0
        %1223 = vmatpush1.bf16.msra.mxu0 0
        %1224 = vmatprep.subr.bf16.mxu0 0
        %1225 = vmatpush1.bf16.msra.mxu0 0
        %1226 = vmatprep.subr.bf16.mxu0 0
        %1227 = vmatpush1.bf16.msra.mxu0 0
        %1228 = vmatprep.subr.bf16.mxu0 0
        %1229 = vmatpush1.bf16.msra.mxu0 0
        %1230 = vmatprep.subr.bf16.mxu0 0
        %1231 = vmatpush1.bf16.msra.mxu0 0
        %1232 = vmatprep.subr.bf16.mxu0 0
        %1233 = vmatpush1.bf16.msra.mxu0 %v1216
        %1234 = vmatprep.subr.bf16.mxu0 0
        %1235 = vmatpush2.bf16.msra.mxu0 0
        %1236 = vmatprep.subr.bf16.mxu0 0
        %1237 = vmatpush2.bf16.msra.mxu0 0
        %1238 = vmatprep.subr.bf16.mxu0 0
        %1239 = vmatpush2.bf16.msra.mxu0 0
        %1240 = vmatprep.subr.bf16.mxu0 0
        %1241 = vmatpush2.bf16.msra.mxu0 0
        %1242 = vmatprep.subr.bf16.mxu0 0
        %1243 = vmatpush2.bf16.msra.mxu0 0
        %1244 = vmatprep.subr.bf16.mxu0 0
        %1245 = vmatpush2.bf16.msra.mxu0 0
        %1246 = vmatprep.subr.bf16.mxu0 0
        %1247 = vmatpush2.bf16.msra.mxu0 0
        %1248 = vmatprep.subr.bf16.mxu0 0
        %1249 = vmatpush2.bf16.msra.mxu0 0
        %1250 = vmatprep.mubr.bf16.mxu0 0
        %1251 = vmatmul.mubr.bf16.gmra.mxu0 %v1212
        %v1252 = vpop.f32.mrf.mxu0
        %v1253 = vadd.f32 0.0, %v1252
        %v1254 = vpop.f32.mrf.mxu0
        %v1255 = vpop.f32.mrf.mxu0
        %v1256 = vpop.f32.mrf.mxu0
        %1257 = vdwg.mxu0
        %1259 = vrot.lane.b32.xlu0 %v1085, 96
        %v1260 = vpop.permute.xlu0 %1259
        %v1262 = vsel %vm1183, %v1207, 0
        %v1265 = vsel %vm1214, %v1260, 0
        %1267 = vmatprep.subr.bf16.mxu0 0
        %1268 = vmatpush1.bf16.msra.mxu0 0
        %1269 = vmatprep.subr.bf16.mxu0 0
        %1270 = vmatpush1.bf16.msra.mxu0 0
        %1271 = vmatprep.subr.bf16.mxu0 0
        %1272 = vmatpush1.bf16.msra.mxu0 0
        %1273 = vmatprep.subr.bf16.mxu0 0
        %1274 = vmatpush1.bf16.msra.mxu0 0
        %1275 = vmatprep.subr.bf16.mxu0 0
        %1276 = vmatpush1.bf16.msra.mxu0 0
        %1277 = vmatprep.subr.bf16.mxu0 0
        %1278 = vmatpush1.bf16.msra.mxu0 0
        %1279 = vmatprep.subr.bf16.mxu0 0
        %1280 = vmatpush1.bf16.msra.mxu0 0
        %1281 = vmatprep.subr.bf16.mxu0 0
        %1282 = vmatpush1.bf16.msra.mxu0 %v1265
        %1283 = vmatprep.subr.bf16.mxu0 0
        %1284 = vmatpush2.bf16.msra.mxu0 0
        %1285 = vmatprep.subr.bf16.mxu0 0
        %1286 = vmatpush2.bf16.msra.mxu0 0
        %1287 = vmatprep.subr.bf16.mxu0 0
        %1288 = vmatpush2.bf16.msra.mxu0 0
        %1289 = vmatprep.subr.bf16.mxu0 0
        %1290 = vmatpush2.bf16.msra.mxu0 0
        %1291 = vmatprep.subr.bf16.mxu0 0
        %1292 = vmatpush2.bf16.msra.mxu0 0
        %1293 = vmatprep.subr.bf16.mxu0 0
        %1294 = vmatpush2.bf16.msra.mxu0 0
        %1295 = vmatprep.subr.bf16.mxu0 0
        %1296 = vmatpush2.bf16.msra.mxu0 0
        %1297 = vmatprep.subr.bf16.mxu0 0
        %1298 = vmatpush2.bf16.msra.mxu0 0
        %1299 = vmatprep.mubr.bf16.mxu0 0
        %1300 = vmatmul.mubr.bf16.gmra.mxu0 %v1262
        %v1301 = vpop.f32.mrf.mxu0
        %v1302 = vadd.f32 0.0, %v1301
        %v1303 = vpop.f32.mrf.mxu0
        %v1304 = vpop.f32.mrf.mxu0
        %v1305 = vpop.f32.mrf.mxu0
        %1306 = vdwg.mxu0
        %v1307 = vpack.c.bf16 %v1302, %v1253
        %v1308 = vld [vmem:[%s767] sm:$0xf]
        %v1309 = vld [vmem:[%s767 + $0x4] sm:$0xf]
        %1311 = vrot.lane.b32.xlu0 %v1080, 112
        %v1312 = vpop.permute.xlu0 %1311
        %1314 = vrot.lane.b32.xlu0 %v1082, 112
        %v1315 = vpop.permute.xlu0 %1314
        %v1317 = vsel %vm1086, %v1312, 0
        %v1320 = vsel %vm1086, %v1315, 0
        %1322 = vmatprep.subr.bf16.mxu0 0
        %1323 = vmatpush1.bf16.xpose.msra.mxu0 0
        %1324 = vmatprep.subr.bf16.mxu0 0
        %1325 = vmatpush1.bf16.xpose.msra.mxu0 0
        %1326 = vmatprep.subr.bf16.mxu0 0
        %1327 = vmatpush1.bf16.xpose.msra.mxu0 0
        %1328 = vmatprep.subr.bf16.mxu0 0
        %1329 = vmatpush1.bf16.xpose.msra.mxu0 0
        %1330 = vmatprep.subr.bf16.mxu0 0
        %1331 = vmatpush1.bf16.xpose.msra.mxu0 0
        %1332 = vmatprep.subr.bf16.mxu0 0
        %1333 = vmatpush1.bf16.xpose.msra.mxu0 0
        %1334 = vmatprep.subr.bf16.mxu0 0
        %1335 = vmatpush1.bf16.xpose.msra.mxu0 0
        %1336 = vmatprep.subr.bf16.mxu0 0
        %1337 = vmatpush1.bf16.xpose.msra.mxu0 %v1320
        %1338 = vmatprep.subr.bf16.mxu0 0
        %1339 = vmatpush2.bf16.xpose.msra.mxu0 0
        %1340 = vmatprep.subr.bf16.mxu0 0
        %1341 = vmatpush2.bf16.xpose.msra.mxu0 0
        %1342 = vmatprep.subr.bf16.mxu0 0
        %1343 = vmatpush2.bf16.xpose.msra.mxu0 0
        %1344 = vmatprep.subr.bf16.mxu0 0
        %1345 = vmatpush2.bf16.xpose.msra.mxu0 0
        %1346 = vmatprep.subr.bf16.mxu0 0
        %1347 = vmatpush2.bf16.xpose.msra.mxu0 0
        %1348 = vmatprep.subr.bf16.mxu0 0
        %1349 = vmatpush2.bf16.xpose.msra.mxu0 0
        %1350 = vmatprep.subr.bf16.mxu0 0
        %1351 = vmatpush2.bf16.xpose.msra.mxu0 0
        %1352 = vmatprep.subr.bf16.mxu0 0
        %1353 = vmatpush2.bf16.xpose.msra.mxu0 0
        %1354 = vmatprep.mubr.bf16.mxu0 0
        %1355 = vmatmul.mubr.bf16.gmra.mxu0 %v1317
        %v1356 = vpop.f32.mrf.mxu0
        %v1357 = vadd.f32 0.0, %v1356
        %v1358 = vpop.f32.mrf.mxu0
        %v1359 = vpop.f32.mrf.mxu0
        %v1360 = vpop.f32.mrf.mxu0
        %1361 = vdwg.mxu0
        %1363 = vrot.lane.b32.xlu0 %v1081, 112
        %v1364 = vpop.permute.xlu0 %1363
        %1366 = vrot.lane.b32.xlu0 %v1083, 112
        %v1367 = vpop.permute.xlu0 %1366
        %v1369 = vsel %vm1086, %v1364, 0
        %v1372 = vsel %vm1086, %v1367, 0
        %1374 = vmatprep.subr.bf16.mxu0 0
        %1375 = vmatpush1.bf16.xpose.msra.mxu0 0
        %1376 = vmatprep.subr.bf16.mxu0 0
        %1377 = vmatpush1.bf16.xpose.msra.mxu0 0
        %1378 = vmatprep.subr.bf16.mxu0 0
        %1379 = vmatpush1.bf16.xpose.msra.mxu0 0
        %1380 = vmatprep.subr.bf16.mxu0 0
        %1381 = vmatpush1.bf16.xpose.msra.mxu0 0
        %1382 = vmatprep.subr.bf16.mxu0 0
        %1383 = vmatpush1.bf16.xpose.msra.mxu0 0
        %1384 = vmatprep.subr.bf16.mxu0 0
        %1385 = vmatpush1.bf16.xpose.msra.mxu0 0
        %1386 = vmatprep.subr.bf16.mxu0 0
        %1387 = vmatpush1.bf16.xpose.msra.mxu0 0
        %1388 = vmatprep.subr.bf16.mxu0 0
        %1389 = vmatpush1.bf16.xpose.msra.mxu0 %v1372
        %1390 = vmatprep.subr.bf16.mxu0 0
        %1391 = vmatpush2.bf16.xpose.msra.mxu0 0
        %1392 = vmatprep.subr.bf16.mxu0 0
        %1393 = vmatpush2.bf16.xpose.msra.mxu0 0
        %1394 = vmatprep.subr.bf16.mxu0 0
        %1395 = vmatpush2.bf16.xpose.msra.mxu0 0
        %1396 = vmatprep.subr.bf16.mxu0 0
        %1397 = vmatpush2.bf16.xpose.msra.mxu0 0
        %1398 = vmatprep.subr.bf16.mxu0 0
        %1399 = vmatpush2.bf16.xpose.msra.mxu0 0
        %1400 = vmatprep.subr.bf16.mxu0 0
        %1401 = vmatpush2.bf16.xpose.msra.mxu0 0
        %1402 = vmatprep.subr.bf16.mxu0 0
        %1403 = vmatpush2.bf16.xpose.msra.mxu0 0
        %1404 = vmatprep.subr.bf16.mxu0 0
        %1405 = vmatpush2.bf16.xpose.msra.mxu0 0
        %1406 = vmatprep.mubr.bf16.mxu0 0
        %1407 = vmatmul.mubr.bf16.gmra.mxu0 %v1369
        %v1408 = vpop.f32.mrf.mxu0
        %v1409 = vadd.f32 0.0, %v1408
        %v1410 = vpop.f32.mrf.mxu0
        %v1411 = vpop.f32.mrf.mxu0
        %v1412 = vpop.f32.mrf.mxu0
        %1413 = vdwg.mxu0
        %v1414 = vmul.f32 %v1357, 0.25
        %v1415 = vmul.f32 %v1409, 0.25
        %v1416 = vadd.f32 %v1414, %v869
        %v1417 = vadd.f32 %v1415, %v869
        %v1418 = vsel %vm1183, %v1416, -inf
        %1419 = vmax.xlane.f32.xlu0 %v1418
        %v1420 = vpop.xlane.xlu0 %1419
        %v1421 = vsel %vm1183, %v1417, -inf
        %1422 = vmax.xlane.f32.xlu0 %v1421
        %v1423 = vpop.xlane.xlu0 %1422
        %v1424 = vsub.f32 %v1416, %v1420
        %v1425 = vsub.f32 %v1417, %v1423
        %v1426 = vmul.f32 %v1424, 1.442695
        %v1427 = vpow.pop %v1426
        %v1428 = vmul.f32 %v1425, 1.442695
        %v1429 = vpow.pop %v1428
        %v1430 = vsel %vm1183, %v1427, 0.0
        %1431 = vadd.xlane.f32.xlu0 %v1430
        %v1432 = vpop.xlane.xlu0 %1431
        %v1433 = vsel %vm1183, %v1429, 0.0
        %1434 = vadd.xlane.f32.xlu0 %v1433
        %v1435 = vpop.xlane.xlu0 %1434
        %v1436 = vrcp.pop %v1432
        %v1437 = vrcp.pop %v1435
        %v1438 = vmul.f32 %v1427, %v1436
        %v1439 = vmul.f32 %v1429, %v1437
        %v1440 = vpack.c.bf16 %v1438, %v1438
        %v1441 = vpack.c.bf16 %v1439, %v1439
        %1442 = vrot.lane.b32.xlu0 %v1084, 80
        %v1443 = vpop.permute.xlu0 %1442
        %v1445 = vsel %vm1183, %v1440, 0
        %v1448 = vsel %vm1214, %v1443, 0
        %1450 = vmatprep.subr.bf16.mxu0 0
        %1451 = vmatpush1.bf16.msra.mxu0 0
        %1452 = vmatprep.subr.bf16.mxu0 0
        %1453 = vmatpush1.bf16.msra.mxu0 0
        %1454 = vmatprep.subr.bf16.mxu0 0
        %1455 = vmatpush1.bf16.msra.mxu0 0
        %1456 = vmatprep.subr.bf16.mxu0 0
        %1457 = vmatpush1.bf16.msra.mxu0 0
        %1458 = vmatprep.subr.bf16.mxu0 0
        %1459 = vmatpush1.bf16.msra.mxu0 0
        %1460 = vmatprep.subr.bf16.mxu0 0
        %1461 = vmatpush1.bf16.msra.mxu0 0
        %1462 = vmatprep.subr.bf16.mxu0 0
        %1463 = vmatpush1.bf16.msra.mxu0 0
        %1464 = vmatprep.subr.bf16.mxu0 0
        %1465 = vmatpush1.bf16.msra.mxu0 %v1448
        %1466 = vmatprep.subr.bf16.mxu0 0
        %1467 = vmatpush2.bf16.msra.mxu0 0
        %1468 = vmatprep.subr.bf16.mxu0 0
        %1469 = vmatpush2.bf16.msra.mxu0 0
        %1470 = vmatprep.subr.bf16.mxu0 0
        %1471 = vmatpush2.bf16.msra.mxu0 0
        %1472 = vmatprep.subr.bf16.mxu0 0
        %1473 = vmatpush2.bf16.msra.mxu0 0
        %1474 = vmatprep.subr.bf16.mxu0 0
        %1475 = vmatpush2.bf16.msra.mxu0 0
        %1476 = vmatprep.subr.bf16.mxu0 0
        %1477 = vmatpush2.bf16.msra.mxu0 0
        %1478 = vmatprep.subr.bf16.mxu0 0
        %1479 = vmatpush2.bf16.msra.mxu0 0
        %1480 = vmatprep.subr.bf16.mxu0 0
        %1481 = vmatpush2.bf16.msra.mxu0 0
        %1482 = vmatprep.mubr.bf16.mxu0 0
        %1483 = vmatmul.mubr.bf16.gmra.mxu0 %v1445
        %v1484 = vpop.f32.mrf.mxu0
        %v1485 = vadd.f32 0.0, %v1484
        %v1486 = vpop.f32.mrf.mxu0
        %v1487 = vpop.f32.mrf.mxu0
        %v1488 = vpop.f32.mrf.mxu0
        %1489 = vdwg.mxu0
        %1490 = vrot.lane.b32.xlu0 %v1085, 80
        %v1491 = vpop.permute.xlu0 %1490
        %v1493 = vsel %vm1183, %v1441, 0
        %v1496 = vsel %vm1214, %v1491, 0
        %1498 = vmatprep.subr.bf16.mxu0 0
        %1499 = vmatpush1.bf16.msra.mxu0 0
        %1500 = vmatprep.subr.bf16.mxu0 0
        %1501 = vmatpush1.bf16.msra.mxu0 0
        %1502 = vmatprep.subr.bf16.mxu0 0
        %1503 = vmatpush1.bf16.msra.mxu0 0
        %1504 = vmatprep.subr.bf16.mxu0 0
        %1505 = vmatpush1.bf16.msra.mxu0 0
        %1506 = vmatprep.subr.bf16.mxu0 0
        %1507 = vmatpush1.bf16.msra.mxu0 0
        %1508 = vmatprep.subr.bf16.mxu0 0
        %1509 = vmatpush1.bf16.msra.mxu0 0
        %1510 = vmatprep.subr.bf16.mxu0 0
        %1511 = vmatpush1.bf16.msra.mxu0 0
        %1512 = vmatprep.subr.bf16.mxu0 0
        %1513 = vmatpush1.bf16.msra.mxu0 %v1496
        %1514 = vmatprep.subr.bf16.mxu0 0
        %1515 = vmatpush2.bf16.msra.mxu0 0
        %1516 = vmatprep.subr.bf16.mxu0 0
        %1517 = vmatpush2.bf16.msra.mxu0 0
        %1518 = vmatprep.subr.bf16.mxu0 0
        %1519 = vmatpush2.bf16.msra.mxu0 0
        %1520 = vmatprep.subr.bf16.mxu0 0
        %1521 = vmatpush2.bf16.msra.mxu0 0
        %1522 = vmatprep.subr.bf16.mxu0 0
        %1523 = vmatpush2.bf16.msra.mxu0 0
        %1524 = vmatprep.subr.bf16.mxu0 0
        %1525 = vmatpush2.bf16.msra.mxu0 0
        %1526 = vmatprep.subr.bf16.mxu0 0
        %1527 = vmatpush2.bf16.msra.mxu0 0
        %1528 = vmatprep.subr.bf16.mxu0 0
        %1529 = vmatpush2.bf16.msra.mxu0 0
        %1530 = vmatprep.mubr.bf16.mxu0 0
        %1531 = vmatmul.mubr.bf16.gmra.mxu0 %v1493
        %v1532 = vpop.f32.mrf.mxu0
        %v1533 = vadd.f32 0.0, %v1532
        %v1534 = vpop.f32.mrf.mxu0
        %v1535 = vpop.f32.mrf.mxu0
        %v1536 = vpop.f32.mrf.mxu0
        %1537 = vdwg.mxu0
        %v1538 = vpack.c.bf16 %v1533, %v1485
        %s1539 = scalar_lea.vmem %s767, 8
        %v1540 = vld [vmem:[%s1539] sm:$0xf]
        %v1541 = vld [vmem:[%s1539 + $0x4] sm:$0xf]
        %v1544 = vunpack.c.l.b16 %v1540
        %v1545 = vunpack.c.l.b16 %v1541
        %v1546 = vpack.c.b16 %v1545, %v1544
        %v1549 = vsel %vm1086, %v1538, 0
        %1551 = vmatprep.subr.bf16.mxu0 0
        %1552 = vmatpush1.bf16.msra.mxu0 0
        %1553 = vmatprep.subr.bf16.mxu0 0
        %1554 = vmatpush1.bf16.msra.mxu0 0
        %1555 = vmatprep.subr.bf16.mxu0 0
        %1556 = vmatpush1.bf16.msra.mxu0 0
        %1557 = vmatprep.subr.bf16.mxu0 0
        %1558 = vmatpush1.bf16.msra.mxu0 0
        %1559 = vmatprep.subr.bf16.mxu0 0
        %1560 = vmatpush1.bf16.msra.mxu0 0
        %1561 = vmatprep.subr.bf16.mxu0 0
        %1562 = vmatpush1.bf16.msra.mxu0 0
        %1563 = vmatprep.subr.bf16.mxu0 0
        %1564 = vmatpush1.bf16.msra.mxu0 0
        %1565 = vmatprep.subr.bf16.mxu0 0
        %1566 = vmatpush1.bf16.msra.mxu0 %v1546
        %1567 = vmatprep.subr.bf16.mxu0 0
        %1568 = vmatpush2.bf16.msra.mxu0 0
        %1569 = vmatprep.subr.bf16.mxu0 0
        %1570 = vmatpush2.bf16.msra.mxu0 0
        %1571 = vmatprep.subr.bf16.mxu0 0
        %1572 = vmatpush2.bf16.msra.mxu0 0
        %1573 = vmatprep.subr.bf16.mxu0 0
        %1574 = vmatpush2.bf16.msra.mxu0 0
        %1575 = vmatprep.subr.bf16.mxu0 0
        %1576 = vmatpush2.bf16.msra.mxu0 0
        %1577 = vmatprep.subr.bf16.mxu0 0
        %1578 = vmatpush2.bf16.msra.mxu0 0
        %1579 = vmatprep.subr.bf16.mxu0 0
        %1580 = vmatpush2.bf16.msra.mxu0 0
        %1581 = vmatprep.subr.bf16.mxu0 0
        %1582 = vmatpush2.bf16.msra.mxu0 0
        %1583 = vmatprep.mubr.bf16.mxu0 0
        %1584 = vmatmul.mubr.bf16.gmra.mxu0 %v1549
        %v1585 = vpop.f32.mrf.mxu0
        %v1586 = vadd.f32 0.0, %v1585
        %v1587 = vpop.f32.mrf.mxu0
        %v1588 = vpop.f32.mrf.mxu0
        %v1589 = vadd.f32 0.0, %v1588
        %v1590 = vpop.f32.mrf.mxu0
        %1591 = vdwg.mxu0
        %v1594 = vunpack.c.l.b16 %v1308
        %v1595 = vunpack.c.l.b16 %v1309
        %v1596 = vpack.c.b16 %v1595, %v1594
        %v1599 = vsel %vm1086, %v1307, 0
        %1601 = vmatprep.subr.bf16.mxu0 0
        %1602 = vmatpush1.bf16.msra.mxu0 0
        %1603 = vmatprep.subr.bf16.mxu0 0
        %1604 = vmatpush1.bf16.msra.mxu0 0
        %1605 = vmatprep.subr.bf16.mxu0 0
        %1606 = vmatpush1.bf16.msra.mxu0 0
        %1607 = vmatprep.subr.bf16.mxu0 0
        %1608 = vmatpush1.bf16.msra.mxu0 0
        %1609 = vmatprep.subr.bf16.mxu0 0
        %1610 = vmatpush1.bf16.msra.mxu0 0
        %1611 = vmatprep.subr.bf16.mxu0 0
        %1612 = vmatpush1.bf16.msra.mxu0 0
        %1613 = vmatprep.subr.bf16.mxu0 0
        %1614 = vmatpush1.bf16.msra.mxu0 0
        %1615 = vmatprep.subr.bf16.mxu0 0
        %1616 = vmatpush1.bf16.msra.mxu0 %v1596
        %1617 = vmatprep.subr.bf16.mxu0 0
        %1618 = vmatpush2.bf16.msra.mxu0 0
        %1619 = vmatprep.subr.bf16.mxu0 0
        %1620 = vmatpush2.bf16.msra.mxu0 0
        %1621 = vmatprep.subr.bf16.mxu0 0
        %1622 = vmatpush2.bf16.msra.mxu0 0
        %1623 = vmatprep.subr.bf16.mxu0 0
        %1624 = vmatpush2.bf16.msra.mxu0 0
        %1625 = vmatprep.subr.bf16.mxu0 0
        %1626 = vmatpush2.bf16.msra.mxu0 0
        %1627 = vmatprep.subr.bf16.mxu0 0
        %1628 = vmatpush2.bf16.msra.mxu0 0
        %1629 = vmatprep.subr.bf16.mxu0 0
        %1630 = vmatpush2.bf16.msra.mxu0 0
        %1631 = vmatprep.subr.bf16.mxu0 0
        %1632 = vmatpush2.bf16.msra.mxu0 0
        %1633 = vmatprep.mubr.bf16.mxu0 0
        %1634 = vmatmul.mubr.bf16.gmra.mxu0 %v1599
        %v1635 = vpop.f32.mrf.mxu0
        %v1636 = vadd.f32 %v1586, %v1635
        %v1637 = vpop.f32.mrf.mxu0
        %v1638 = vpop.f32.mrf.mxu0
        %v1639 = vadd.f32 %v1589, %v1638
        %v1640 = vpop.f32.mrf.mxu0
        %1641 = vdwg.mxu0
        %v1642 = vlaneseq
        %v1643 = vshrl.u32 %v1642, 7
        %v1644 = vsub.s32 5, %v1643
        %v1645 = vrot.slane %v862, %v1644
        %v1646 = vadd.f32 %v1636, %v1645
        %v1647 = vadd.f32 %v1639, %v1645
        %v1648 = vadd.f32 %v908, %v1646
        %v1649 = vadd.f32 %v909, %v1647
        %v1650 = vsel %vm870, %v1648, 0.0
        %1651 = vadd.xlane.f32.xlu0 %v1650
        %v1652 = vpop.xlane.xlu0 %1651
        %v1653 = vsel %vm870, %v1649, 0.0
        %1654 = vadd.xlane.f32.xlu0 %v1653
        %v1655 = vpop.xlane.xlu0 %1654
        %v1656 = vmul.f32 %v1652, %v877
        %v1657 = vmul.f32 %v1655, %v877
        %v1658 = vsub.f32 %v1648, %v1656
        %v1659 = vsub.f32 %v1649, %v1657
        %v1660 = vmul.f32 %v1658, %v1658
        %v1661 = vmul.f32 %v1659, %v1659
        %v1662 = vsel %vm870, %v1660, 0.0
        %1663 = vadd.xlane.f32.xlu0 %v1662
        %v1664 = vpop.xlane.xlu0 %1663
        %v1665 = vsel %vm870, %v1661, 0.0
        %1666 = vadd.xlane.f32.xlu0 %v1665
        %v1667 = vpop.xlane.xlu0 %1666
        %v1668 = vmul.f32 %v1664, %v877
        %v1669 = vmul.f32 %v1667, %v877
        %v1670 = vadd.f32 %v1668, 1e-08
        %v1671 = vadd.f32 %v1669, 1e-08
        %v1672 = vrsqrt.pop %v1670
        %v1673 = vrsqrt.pop %v1671
        %v1674 = vmul.f32 %v1658, %v1672
        %v1675 = vmul.f32 %v1659, %v1673
        %v1676 = vlaneseq
        %v1677 = vshrl.u32 %v1676, 7
        %v1678 = vsub.s32 6, %v1677
        %v1679 = vrot.slane %v862, %v1678
        %v1680 = vmul.f32 %v1674, %v1679
        %v1681 = vmul.f32 %v1675, %v1679
        %v1682 = vlaneseq
        %v1683 = vshrl.u32 %v1682, 7
        %v1684 = vsub.s32 7, %v1683
        %v1685 = vrot.slane %v862, %v1684
        %v1686 = vadd.f32 %v1680, %v1685
        %v1687 = vadd.f32 %v1681, %v1685
        %v1688 = vpack.c.bf16 %v1687, %v1686
        %v1689 = vld [vmem:[%s772] sm:$0xf]
        %v1690 = vld [vmem:[%s772 + $0x4] sm:$0xf]
        %v1691 = vld [vmem:[%s772 + $0x8] sm:$0xf]
        %v1692 = vld [vmem:[%s772 + $0xc] sm:$0xf]
        %v1693 = vlaneseq
        %v1694 = vshrl.u32 %v1693, 7
        %v1695 = vsub.s32 0, %v1694
        %v1696 = vrot.slane %v863, %v1695
        %v1701 = vunpack.c.l.b16 %v1689
        %v1702 = vunpack.c.l.b16 %v1690
        %v1703 = vunpack.c.l.b16 %v1691
        %v1704 = vunpack.c.l.b16 %v1692
        %v1705 = vpack.c.b16 %v1702, %v1701
        %v1706 = vpack.c.b16 %v1704, %v1703
        %v1708 = vsel %vm870, %v1688, 0
        %v1711 = vsel %vm870, %v1705, 0
        %v1714 = vsel %vm870, %v1706, 0
        %1716 = vmatprep.subr.bf16.mxu0 0
        %1717 = vmatpush1.bf16.xpose.msra.mxu0 0
        %1718 = vmatprep.subr.bf16.mxu0 0
        %1719 = vmatpush1.bf16.xpose.msra.mxu0 0
        %1720 = vmatprep.subr.bf16.mxu0 0
        %1721 = vmatpush1.bf16.xpose.msra.mxu0 0
        %1722 = vmatprep.subr.bf16.mxu0 0
        %1723 = vmatpush1.bf16.xpose.msra.mxu0 0
        %1724 = vmatprep.subr.bf16.mxu0 0
        %1725 = vmatpush1.bf16.xpose.msra.mxu0 0
        %1726 = vmatprep.subr.bf16.mxu0 0
        %1727 = vmatpush1.bf16.xpose.msra.mxu0 0
        %1728 = vmatprep.subr.bf16.mxu0 0
        %1729 = vmatpush1.bf16.xpose.msra.mxu0 %v1714
        %1730 = vmatprep.subr.bf16.mxu0 0
        %1731 = vmatpush1.bf16.xpose.msra.mxu0 %v1711
        %1732 = vmatprep.subr.bf16.mxu0 0
        %1733 = vmatpush2.bf16.xpose.msra.mxu0 0
        %1734 = vmatprep.subr.bf16.mxu0 0
        %1735 = vmatpush2.bf16.xpose.msra.mxu0 0
        %1736 = vmatprep.subr.bf16.mxu0 0
        %1737 = vmatpush2.bf16.xpose.msra.mxu0 0
        %1738 = vmatprep.subr.bf16.mxu0 0
        %1739 = vmatpush2.bf16.xpose.msra.mxu0 0
        %1740 = vmatprep.subr.bf16.mxu0 0
        %1741 = vmatpush2.bf16.xpose.msra.mxu0 0
        %1742 = vmatprep.subr.bf16.mxu0 0
        %1743 = vmatpush2.bf16.xpose.msra.mxu0 0
        %1744 = vmatprep.subr.bf16.mxu0 0
        %1745 = vmatpush2.bf16.xpose.msra.mxu0 0
        %1746 = vmatprep.subr.bf16.mxu0 0
        %1747 = vmatpush2.bf16.xpose.msra.mxu0 0
        %1748 = vmatprep.mubr.bf16.mxu0 0
        %1749 = vmatmul.mubr.bf16.gmra.mxu0 %v1708
        %v1750 = vpop.f32.mrf.mxu0
        %v1751 = vadd.f32 %v1696, %v1750
        %v1752 = vpop.f32.mrf.mxu0
        %v1753 = vpop.f32.mrf.mxu0
        %v1754 = vadd.f32 %v1696, %v1753
        %v1755 = vpop.f32.mrf.mxu0
        %1756 = vdwg.mxu0
        %v1757 = vmax.f32 %v1751, 0.0
        %v1758 = vmax.f32 %v1754, 0.0
        %v1759 = vpack.c.bf16 %v1758, %v1757
        %v1760 = vld [vmem:[%s777] sm:$0xf]
        %v1761 = vld [vmem:[%s777 + $0x4] sm:$0xf]
        %v1762 = vld [vmem:[%s777 + $0x8] sm:$0xf]
        %v1763 = vld [vmem:[%s777 + $0xc] sm:$0xf]
        %v1764 = vlaneseq
        %v1765 = vshrl.u32 %v1764, 7
        %v1766 = vsub.s32 1, %v1765
        %v1767 = vrot.slane %v863, %v1766
        %v1772 = vunpack.c.l.b16 %v1760
        %v1773 = vunpack.c.l.b16 %v1761
        %v1774 = vunpack.c.l.b16 %v1762
        %v1775 = vunpack.c.l.b16 %v1763
        %v1776 = vpack.c.b16 %v1773, %v1772
        %v1777 = vpack.c.b16 %v1775, %v1774
        %v1779 = vsel %vm870, %v1759, 0
        %v1782 = vsel %vm870, %v1776, 0
        %v1785 = vsel %vm870, %v1777, 0
        %1787 = vmatprep.subr.bf16.mxu0 0
        %1788 = vmatpush1.bf16.xpose.msra.mxu0 0
        %1789 = vmatprep.subr.bf16.mxu0 0
        %1790 = vmatpush1.bf16.xpose.msra.mxu0 0
        %1791 = vmatprep.subr.bf16.mxu0 0
        %1792 = vmatpush1.bf16.xpose.msra.mxu0 0
        %1793 = vmatprep.subr.bf16.mxu0 0
        %1794 = vmatpush1.bf16.xpose.msra.mxu0 0
        %1795 = vmatprep.subr.bf16.mxu0 0
        %1796 = vmatpush1.bf16.xpose.msra.mxu0 0
        %1797 = vmatprep.subr.bf16.mxu0 0
        %1798 = vmatpush1.bf16.xpose.msra.mxu0 0
        %1799 = vmatprep.subr.bf16.mxu0 0
        %1800 = vmatpush1.bf16.xpose.msra.mxu0 %v1785
        %1801 = vmatprep.subr.bf16.mxu0 0
        %1802 = vmatpush1.bf16.xpose.msra.mxu0 %v1782
        %1803 = vmatprep.subr.bf16.mxu0 0
        %1804 = vmatpush2.bf16.xpose.msra.mxu0 0
        %1805 = vmatprep.subr.bf16.mxu0 0
        %1806 = vmatpush2.bf16.xpose.msra.mxu0 0
        %1807 = vmatprep.subr.bf16.mxu0 0
        %1808 = vmatpush2.bf16.xpose.msra.mxu0 0
        %1809 = vmatprep.subr.bf16.mxu0 0
        %1810 = vmatpush2.bf16.xpose.msra.mxu0 0
        %1811 = vmatprep.subr.bf16.mxu0 0
        %1812 = vmatpush2.bf16.xpose.msra.mxu0 0
        %1813 = vmatprep.subr.bf16.mxu0 0
        %1814 = vmatpush2.bf16.xpose.msra.mxu0 0
        %1815 = vmatprep.subr.bf16.mxu0 0
        %1816 = vmatpush2.bf16.xpose.msra.mxu0 0
        %1817 = vmatprep.subr.bf16.mxu0 0
        %1818 = vmatpush2.bf16.xpose.msra.mxu0 0
        %1819 = vmatprep.mubr.bf16.mxu0 0
        %1820 = vmatmul.mubr.bf16.gmra.mxu0 %v1779
        %v1821 = vpop.f32.mrf.mxu0
        %v1822 = vadd.f32 %v1767, %v1821
        %v1823 = vpop.f32.mrf.mxu0
        %v1824 = vpop.f32.mrf.mxu0
        %v1825 = vadd.f32 %v1767, %v1824
        %v1826 = vpop.f32.mrf.mxu0
        %1827 = vdwg.mxu0
        %v1828 = vadd.f32 %v1822, %v1686
        %v1829 = vadd.f32 %v1825, %v1687
        %p1830 = scmp.ne.s32.totalorder %s35, 1
        // Predicated region
        $region85: #{sasrec_colr_forward.1} parent=79 // pred_check
          %p1831 = pneg %p1830
        $region86: #{sasrec_colr_forward.1} parent=79 // pred_check_branch
          %1833 = sbr.rel (%p1831) target = $region88
        $region87: #{sasrec_colr_forward.1} parent=79 // pred_region
          %1834 = vst.msk [vmem:[#allocation2] sm:$0xff] %vm870, %v1828
          %1835 = vst.msk [vmem:[#allocation2 + $0x8] sm:$0xff] %vm870, %v1829
        $region88: #{sasrec_colr_forward.1} parent=79 // pred_fallthru
          _
        %p1836 = scmp.eq.s32.totalorder %s35, 1
        // Predicated region
        $region89: #{sasrec_colr_forward.1} parent=79 // pred_check
          %p1837 = pneg %p1836
        $region90: #{sasrec_colr_forward.1} parent=79 // pred_check_branch
          %1839 = sbr.rel (%p1837) target = $region92
        $region91: #{sasrec_colr_forward.1} parent=79 // pred_region
          %v1840 = vld [vmem:[%s14] sm:$0x1]
          %v1841 = vld [vmem:[%s14 + $0x1] sm:$0x1]
          %v1842 = vsel %vm870, %v1828, 0.0
          %1843 = vadd.xlane.f32.xlu0 %v1842
          %v1844 = vpop.xlane.xlu0 %1843
          %v1845 = vsel %vm870, %v1829, 0.0
          %1846 = vadd.xlane.f32.xlu0 %v1845
          %v1847 = vpop.xlane.xlu0 %1846
          %v1848 = vmul.f32 %v1844, %v877
          %v1849 = vmul.f32 %v1847, %v877
          %v1850 = vsub.f32 %v1828, %v1848
          %v1851 = vsub.f32 %v1829, %v1849
          %v1852 = vmul.f32 %v1850, %v1850
          %v1853 = vmul.f32 %v1851, %v1851
          %v1854 = vsel %vm870, %v1852, 0.0
          %1855 = vadd.xlane.f32.xlu0 %v1854
          %v1856 = vpop.xlane.xlu0 %1855
          %v1857 = vsel %vm870, %v1853, 0.0
          %1858 = vadd.xlane.f32.xlu0 %v1857
          %v1859 = vpop.xlane.xlu0 %1858
          %v1860 = vmul.f32 %v1856, %v877
          %v1861 = vmul.f32 %v1859, %v877
          %v1862 = vadd.f32 %v1860, 1e-08
          %v1863 = vadd.f32 %v1861, 1e-08
          %v1864 = vrsqrt.pop %v1862
          %v1865 = vrsqrt.pop %v1863
          %v1866 = vmul.f32 %v1850, %v1864
          %v1867 = vmul.f32 %v1851, %v1865
          %v1868 = vlaneseq
          %v1869 = vshrl.u32 %v1868, 7
          %v1870 = vsub.s32 0, %v1869
          %v1871 = vrot.slane %v1840, %v1870
          %v1872 = vmul.f32 %v1866, %v1871
          %v1873 = vmul.f32 %v1867, %v1871
          %v1874 = vlaneseq
          %v1875 = vshrl.u32 %v1874, 7
          %v1876 = vsub.s32 0, %v1875
          %v1877 = vrot.slane %v1841, %v1876
          %v1878 = vadd.f32 %v1872, %v1877
          %v1879 = vadd.f32 %v1873, %v1877
          %v1880 = vld [vmem:[%s733] sm:$0xf]
          %v1881 = vld [vmem:[%s733 + $0x4] sm:$0xf]
          %v1882 = vld [vmem:[%s7] sm:$0x3]
          %v1883 = vld [vmem:[%s739] sm:$0xf]
          %v1884 = vld [vmem:[%s739 + $0x4] sm:$0xf]
          %v1885 = vunpack.c.l.bf16 %v1883
          %v1886 = vunpack.c.l.bf16 %v1884
          %v1889 = vunpack.c.l.b16 %v1880
          %v1890 = vunpack.c.l.b16 %v1881
          %v1891 = vpack.c.b16 %v1890, %v1889
          %vm1892 = vcmask 31744
          %v1894 = vsel %vm1892, %v1891, 0
          %vm1896 = vcmask 1041408
          %v1898 = vsel %vm1896, %v1882, 0
          %1900 = vmatprep.subr.bf16.mxu0 0
          %1901 = vmatpush1.bf16.msra.mxu0 0
          %1902 = vmatprep.subr.bf16.mxu0 0
          %1903 = vmatpush1.bf16.msra.mxu0 0
          %1904 = vmatprep.subr.bf16.mxu0 0
          %1905 = vmatpush1.bf16.msra.mxu0 0
          %1906 = vmatprep.subr.bf16.mxu0 0
          %1907 = vmatpush1.bf16.msra.mxu0 0
          %1908 = vmatprep.subr.bf16.mxu0 0
          %1909 = vmatpush1.bf16.msra.mxu0 0
          %1910 = vmatprep.subr.bf16.mxu0 0
          %1911 = vmatpush1.bf16.msra.mxu0 0
          %1912 = vmatprep.subr.bf16.mxu0 0
          %1913 = vmatpush1.bf16.msra.mxu0 0
          %1914 = vmatprep.subr.bf16.mxu0 0
          %1915 = vmatpush1.bf16.msra.mxu0 %v1898
          %1916 = vmatprep.subr.bf16.mxu0 0
          %1917 = vmatpush2.bf16.msra.mxu0 0
          %1918 = vmatprep.subr.bf16.mxu0 0
          %1919 = vmatpush2.bf16.msra.mxu0 0
          %1920 = vmatprep.subr.bf16.mxu0 0
          %1921 = vmatpush2.bf16.msra.mxu0 0
          %1922 = vmatprep.subr.bf16.mxu0 0
          %1923 = vmatpush2.bf16.msra.mxu0 0
          %1924 = vmatprep.subr.bf16.mxu0 0
          %1925 = vmatpush2.bf16.msra.mxu0 0
          %1926 = vmatprep.subr.bf16.mxu0 0
          %1927 = vmatpush2.bf16.msra.mxu0 0
          %1928 = vmatprep.subr.bf16.mxu0 0
          %1929 = vmatpush2.bf16.msra.mxu0 0
          %1930 = vmatprep.subr.bf16.mxu0 0
          %1931 = vmatpush2.bf16.msra.mxu0 0
          %1932 = vmatprep.mubr.bf16.mxu0 0
          %1933 = vmatmul.mubr.bf16.gmra.mxu0 %v1894
          %v1934 = vpop.f32.mrf.mxu0
          %v1935 = vadd.f32 %v1885, %v1934
          %v1936 = vpop.f32.mrf.mxu0
          %v1937 = vpop.f32.mrf.mxu0
          %v1938 = vadd.f32 %v1886, %v1937
          %v1939 = vpop.f32.mrf.mxu0
          %1940 = vdwg.mxu0
          %v1941 = vld [vmem:[%s745] sm:$0xf]
          %v1942 = vld [vmem:[%s745 + $0x4] sm:$0xf]
          %v1943 = vld [vmem:[%s751] sm:$0xf]
          %v1944 = vld [vmem:[%s751 + $0x4] sm:$0xf]
          %v1945 = vunpack.c.l.bf16 %v1943
          %v1946 = vunpack.c.l.bf16 %v1944
          %v1949 = vunpack.c.l.b16 %v1941
          %v1950 = vunpack.c.l.b16 %v1942
          %v1951 = vpack.c.b16 %v1950, %v1949
          %v1953 = vsel %vm1892, %v1951, 0
          %1955 = vmatprep.subr.bf16.mxu0 0
          %1956 = vmatpush1.bf16.msra.mxu0 0
          %1957 = vmatprep.subr.bf16.mxu0 0
          %1958 = vmatpush1.bf16.msra.mxu0 0
          %1959 = vmatprep.subr.bf16.mxu0 0
          %1960 = vmatpush1.bf16.msra.mxu0 0
          %1961 = vmatprep.subr.bf16.mxu0 0
          %1962 = vmatpush1.bf16.msra.mxu0 0
          %1963 = vmatprep.subr.bf16.mxu0 0
          %1964 = vmatpush1.bf16.msra.mxu0 0
          %1965 = vmatprep.subr.bf16.mxu0 0
          %1966 = vmatpush1.bf16.msra.mxu0 0
          %1967 = vmatprep.subr.bf16.mxu0 0
          %1968 = vmatpush1.bf16.msra.mxu0 0
          %1969 = vmatprep.subr.bf16.mxu0 0
          %1970 = vmatpush1.bf16.msra.mxu0 %v1898
          %1971 = vmatprep.subr.bf16.mxu0 0
          %1972 = vmatpush2.bf16.msra.mxu0 0
          %1973 = vmatprep.subr.bf16.mxu0 0
          %1974 = vmatpush2.bf16.msra.mxu0 0
          %1975 = vmatprep.subr.bf16.mxu0 0
          %1976 = vmatpush2.bf16.msra.mxu0 0
          %1977 = vmatprep.subr.bf16.mxu0 0
          %1978 = vmatpush2.bf16.msra.mxu0 0
          %1979 = vmatprep.subr.bf16.mxu0 0
          %1980 = vmatpush2.bf16.msra.mxu0 0
          %1981 = vmatprep.subr.bf16.mxu0 0
          %1982 = vmatpush2.bf16.msra.mxu0 0
          %1983 = vmatprep.subr.bf16.mxu0 0
          %1984 = vmatpush2.bf16.msra.mxu0 0
          %1985 = vmatprep.subr.bf16.mxu0 0
          %1986 = vmatpush2.bf16.msra.mxu0 0
          %1987 = vmatprep.mubr.bf16.mxu0 0
          %1988 = vmatmul.mubr.bf16.gmra.mxu0 %v1953
          %v1989 = vpop.f32.mrf.mxu0
          %v1990 = vadd.f32 %v1945, %v1989
          %v1991 = vpop.f32.mrf.mxu0
          %v1992 = vpop.f32.mrf.mxu0
          %v1993 = vadd.f32 %v1946, %v1992
          %v1994 = vpop.f32.mrf.mxu0
          %1995 = vdwg.mxu0
          %v1996 = vmul.f32 %v1878, %v1935
          %v1997 = vmul.f32 %v1879, %v1938
          %v1998 = vsel %vm870, %v1996, 0.0
          %1999 = vadd.xlane.f32.xlu0 %v1998
          %v2000 = vpop.xlane.xlu0 %1999
          %v2001 = vsel %vm870, %v1997, 0.0
          %2002 = vadd.xlane.f32.xlu0 %v2001
          %v2003 = vpop.xlane.xlu0 %2002
          %v2006 = vlaneseq
          %v2007 = vshrl.u32 %v2006, 7
          %v2008 = vsub.s32 %v867, %v2007
          %v2009 = vrot.slane %v2000, %v2008
          %v2010 = vlaneseq
          %v2011 = vshrl.u32 %v2010, 7
          %v2012 = vsub.s32 %v867, %v2011
          %v2013 = vrot.slane %v2003, %v2012
          %vm2014 = vcmask 1041409
          %v2015 = vsel %vm2014, %v2013, %v2009
          %vm2017 = vcmask 58368
          %2018 = vst.msk [vmem:[#allocation3] sm:$0x3] %vm2017, %v2015
          %v2019 = vmul.f32 %v1878, %v1990
          %v2020 = vmul.f32 %v1879, %v1993
          %v2021 = vsel %vm870, %v2019, 0.0
          %2022 = vadd.xlane.f32.xlu0 %v2021
          %v2023 = vpop.xlane.xlu0 %2022
          %v2024 = vsel %vm870, %v2020, 0.0
          %2025 = vadd.xlane.f32.xlu0 %v2024
          %v2026 = vpop.xlane.xlu0 %2025
          %v2029 = vlaneseq
          %v2030 = vshrl.u32 %v2029, 7
          %v2031 = vsub.s32 %v867, %v2030
          %v2032 = vrot.slane %v2023, %v2031
          %v2033 = vlaneseq
          %v2034 = vshrl.u32 %v2033, 7
          %v2035 = vsub.s32 %v867, %v2034
          %v2036 = vrot.slane %v2026, %v2035
          %v2037 = vsel %vm2014, %v2036, %v2032
          %2039 = vst.msk [vmem:[#allocation5] sm:$0x3] %vm2017, %v2037
        $region92: #{sasrec_colr_forward.1} parent=79 // pred_fallthru
          _
        // Predicated region
        $region93: #{sasrec_colr_forward.1} parent=79 // pred_check
          %p2040 = pneg %p440
        $region94: #{sasrec_colr_forward.1} parent=79 // pred_check_branch
          %2042 = sbr.rel (%p2040) target = $region96
        $region95: #{sasrec_colr_forward.1} parent=79 // pred_region
          %s2044 = ssub.s32 32, 32
          %2045 = vsyncadd [#allocation4], %s2044
          %s2046 = smul.addr %s34, 32
          %s2047 = scalar_lea.hbm %s15, %s2046
          %s2049 = sshll.u32 [#allocation3], 4
          %s2050 = int_to_ptr.vmem [resolvable:$true] %s2049
          %2052 = dma.vmem_to_hbm [thread:$0]  %s2050, 32, %s2047, [#allocation4]
        $region96: #{sasrec_colr_forward.1} parent=79 // pred_fallthru
          _
        // Predicated region
        $region97: #{sasrec_colr_forward.1} parent=79 // pred_check
          %p2053 = pneg %p466
        $region98: #{sasrec_colr_forward.1} parent=79 // pred_check_branch
          %2055 = sbr.rel (%p2053) target = $region100
        $region99: #{sasrec_colr_forward.1} parent=79 // pred_region
          %s2057 = ssub.s32 32, 32
          %2058 = vsyncadd [#allocation6], %s2057
          %s2059 = smul.addr %s34, 32
          %s2060 = scalar_lea.hbm %s16, %s2059
          %s2062 = sshll.u32 [#allocation5], 4
          %s2063 = int_to_ptr.vmem [resolvable:$true] %s2062
          %2065 = dma.vmem_to_hbm [thread:$0]  %s2063, 32, %s2060, [#allocation6]
        $region100: #{sasrec_colr_forward.1} parent=79 // pred_fallthru
          _
        // Predicated region
        $region101: #{sasrec_colr_forward.1} parent=79 // pred_check
          %p2066 = pneg %p440
        $region102: #{sasrec_colr_forward.1} parent=79 // pred_check_branch
          %2068 = sbr.rel (%p2066) target = $region104
        $region103: #{sasrec_colr_forward.1} parent=79 // pred_region
          %2069 = dma.done [#allocation4], 32
        $region104: #{sasrec_colr_forward.1} parent=79 // pred_fallthru
          _
        // Predicated region
        $region105: #{sasrec_colr_forward.1} parent=79 // pred_check
          %p2070 = pneg %p466
        $region106: #{sasrec_colr_forward.1} parent=79 // pred_check_branch
          %2072 = sbr.rel (%p2070) target = $region108
        $region107: #{sasrec_colr_forward.1} parent=79 // pred_region
          %2073 = dma.done [#allocation6], 32
        $region108: #{sasrec_colr_forward.1} parent=79 // pred_fallthru
          _
      $region80: #{sasrec_colr_forward.1} parent=5 // pred_fallthru
        _
      %p2074 = scmp.le.s32.totalorder 2, %s25
      // Predicated region
      $region109: #{sasrec_colr_forward.1} parent=5 // pred_check
        %p2075 = pneg %p2074
      $region110: #{sasrec_colr_forward.1} parent=5 // pred_check_branch
        %2077 = sbr.rel (%p2075) target = $region112
      $region111: #{sasrec_colr_forward.1} parent=5 // pred_region
        %s2078 = ssub.s32 %s25, 2
      $region112: #{sasrec_colr_forward.1} parent=5 // pred_fallthru
        _
    $region6: #{sasrec_colr_forward.1} parent=1 // loop_footer
      %s29 = sadd.s32 1, %s25
    $region7: #{sasrec_colr_forward.1} parent=1 // loop_footer_branch
      %24 = sbr.rel target = $region3
    $region8: #{sasrec_colr_forward.1} parent=1 // loop_exit
      _
    %2079 = vsyncpa [#allocation4], 1
    %s2080 = scalar_lea.sflag [#allocation4], 1
    %2081 = vsyncpa %s2080, 1
    %2082 = vsyncpa [#allocation6], 1

</llo_original>
